<compile_context>
chip_gen: v7x
topology: tpu7x:2x2x1
jax: 0.10.0
libtpu: 0.0.40
codegen_flags: <defaults>
</compile_context>

<pallas_src>
import functools
import math

import jax
import jax.numpy as jnp
from jax.experimental import pallas as pl
from jax.experimental.pallas import tpu as pltpu


# ------------------------------ fused kernel --------------------------------

def _mutual_mha_kernel(wq_ref, wk_ref, wv_ref, bq_ref, bk_ref, bv_ref,
                       wo_ref, bo_ref, *x_o_refs, S, scale, compute_dtype):
    """One grid step == one batch element, all S streams.

    wq/wk/wv : (S, D, E)  per-stream projection weights (pre-split at init)
    bq/bk/bv : (S, 1, E)  per-stream projection biases
    wo       : (S, E, D)  per-stream output weights
    bo       : (S, 1, D)  per-stream output biases
    x_o_refs : S input refs of shape (L, D) followed by S output refs of shape (L, D)
    """
    x_refs = x_o_refs[:S]
    o_refs = x_o_refs[S:]

    # Stack the S streams of this batch element into (S, L, D).  This is a
    # VMEM-local concat along the untiled leading axis (no HBM traffic) and lets
    # every projection / attention step below be a single batched op.
    x = jnp.stack([x_refs[s][...] for s in range(S)], axis=0)           # (S, L, D) f32
    xc = x.astype(compute_dtype)

    wq = wq_ref[...].astype(compute_dtype)
    wk = wk_ref[...].astype(compute_dtype)
    wv = wv_ref[...].astype(compute_dtype)
    wo = wo_ref[...].astype(compute_dtype)

    # (1) Per-stream Q/K/V projections as batched matmuls — only each stream's own
    #     weight block is touched (no wasted columns), f32 accumulation on the MXU.
    q = jnp.einsum('sld,sde->sle', xc, wq,
                   preferred_element_type=jnp.float32) + bq_ref[...]     # (S, L, E)
    k = jnp.einsum('sld,sde->sle', xc, wk,
                   preferred_element_type=jnp.float32) + bk_ref[...]     # (S, L, E)
    v = jnp.einsum('sld,sde->sle', xc, wv,
                   preferred_element_type=jnp.float32) + bv_ref[...]     # (S, L, E)

    # (2) Cross-stream query: sum over the OTHER streams == q_total - q_s (O(S) adds).
    q_cross = jnp.sum(q, axis=0, keepdims=True) - q                      # (S, L, E)

    # (3) Scaled softmax attention, batched over streams.
    scores = jnp.einsum('sle,sme->slm',
                        q_cross.astype(compute_dtype), k.astype(compute_dtype),
                        preferred_element_type=jnp.float32) * scale      # (S, L, L)
    m = jnp.max(scores, axis=-1, keepdims=True)
    p = jnp.exp(scores - m)
    denom = jnp.sum(p, axis=-1, keepdims=True)
    ctx = jnp.einsum('slm,sme->sle',
                     p.astype(compute_dtype), v.astype(compute_dtype),
                     preferred_element_type=jnp.float32)                 # (S, L, E)
    ctx = ctx * pl.reciprocal(denom, approx=False)   # exact, for parity with reference

    # (4) Output projection (batched) + residual; the context never leaves vregs.
    out = jnp.einsum('sle,sed->sld', ctx.astype(compute_dtype), wo,
                     preferred_element_type=jnp.float32) + bo_ref[...] + x

    # TODO(synk): for production shapes with D << 128, present a lane-dense
    # (L*D)-wide output layout in the wrapper instead of these masked (L, D) stores.
    for s in range(S):
        o_refs[s][...] = out[s].astype(o_refs[s].dtype)


def fused_mutual_mha(xs, params, *, compute_dtype=jnp.float32):
    S = len(xs)
    N, L, D = xs[0].shape
    E = params["hidden"]
    scale = 1.0 / math.sqrt(E)

    wq, wk, wv = params["wq"], params["wk"], params["wv"]
    bq, bk, bv = params["bq"], params["bk"], params["bv"]
    wo, bo = params["wo"], params["bo"]

    def const_spec(arr):
        # Full-array resident block; constant index map => DMA'd once, stays in VMEM.
        return pl.BlockSpec(arr.shape, lambda n: (0, 0, 0))

    # Per-batch tile of each stream (leading batch dim squeezed away).
    x_spec = pl.BlockSpec((None, L, D), lambda n: (n, 0, 0))

    kern = functools.partial(_mutual_mha_kernel, S=S, scale=scale,
                             compute_dtype=compute_dtype)

    out = pl.pallas_call(
        kern,
        out_shape=tuple(jax.ShapeDtypeStruct((N, L, D), xs[0].dtype) for _ in range(S)),
        grid=(N,),
        in_specs=[const_spec(wq), const_spec(wk), const_spec(wv),
                  const_spec(bq), const_spec(bk), const_spec(bv),
                  const_spec(wo), const_spec(bo)] + [x_spec] * S,
        out_specs=tuple(x_spec for _ in range(S)),
        compiler_params=pltpu.CompilerParams(dimension_semantics=("parallel",)),
    )(wq, wk, wv, bq, bk, bv, wo, bo, *xs)
    return list(out)


# ------------------------------ module wrapper -------------------------------

def init_params(key, num_streams, in_features, hidden_features=None, num_heads=1,
                param_dtype=jnp.float32):
    """nn.init.normal_(weight, 0, 0.01), bias = 0.

    Weights are stored stacked per stream and pre-split into q/k/v blocks so the
    forward pass never concatenates or slices weights.
    """
    E = hidden_features if hidden_features is not None else in_features
    he = E * num_heads
    keys = jax.random.split(key, 2 * num_streams)
    wq, wk, wv, wo = [], [], [], []
    for s in range(num_streams):
        w_embed = 0.01 * jax.random.normal(keys[2 * s], (in_features, 3 * he), jnp.float32)
        wq.append(w_embed[:, :he])
        wk.append(w_embed[:, he:2 * he])
        wv.append(w_embed[:, 2 * he:])
        wo.append(0.01 * jax.random.normal(keys[2 * s + 1], (he, in_features), jnp.float32))
    return dict(
        wq=jnp.stack(wq).astype(param_dtype),                 # (S, D, E)
        wk=jnp.stack(wk).astype(param_dtype),                 # (S, D, E)
        wv=jnp.stack(wv).astype(param_dtype),                 # (S, D, E)
        bq=jnp.zeros((num_streams, 1, he), jnp.float32),      # (S, 1, E)
        bk=jnp.zeros((num_streams, 1, he), jnp.float32),
        bv=jnp.zeros((num_streams, 1, he), jnp.float32),
        wo=jnp.stack(wo).astype(param_dtype),                 # (S, E, D)
        bo=jnp.zeros((num_streams, 1, in_features), jnp.float32),   # (S, 1, D)
        hidden=E, num_heads=num_heads, num_streams=num_streams)


def mutual_mha_forward(xs, params, *, compute_dtype=jnp.float32):
    S = params["num_streams"]
    if S < 2:
        raise ValueError(f"num_streams must be >= 2, got {S}")
    if len(xs) != S:
        raise ValueError(f"Number of input streams must be {S}. Got {len(xs)}.")
    if len({x.shape for x in xs}) != 1:
        raise ValueError("Different dimensions of streams are not supported.")
    if params["num_heads"] != 1:
        # TODO(synk): generalize the fused kernel to num_heads > 1; the reference
        # forward's .view(N, L, hidden_features) only supports num_heads == 1 anyway.
        raise NotImplementedError("fused kernel implements num_heads == 1 only")
    return fused_mutual_mha(xs, params, compute_dtype=compute_dtype)


# ------------------------------ JAX reference --------------------------------

def reference_forward(xs, params):
    S = len(xs)
    E = params["hidden"]
    scale = 1.0 / math.sqrt(E)
    qs, ks, vs = [], [], []
    for s in range(S):
        qs.append(xs[s] @ params["wq"][s] + params["bq"][s])
        ks.append(xs[s] @ params["wk"][s] + params["bk"][s])
        vs.append(xs[s] @ params["wv"][s] + params["bv"][s])
    outs = []
    for s in range(S):
        q = sum(qs[o] for o in range(S) if o != s)
        sc = jnp.einsum("nle,nme->nlm", q, ks[s]) * scale
        p = jax.nn.softmax(sc, axis=-1)
        ctx = jnp.einsum("nlm,nme->nle", p, vs[s])
        outs.append(ctx @ params["wo"][s] + params["bo"][s] + xs[s])
    return outs


# ----------------------------------- main ------------------------------------

if __name__ == "__main__":
    num_streams = 2
    N, L, D = 2, 8, 16          # batch, sequence, in_features
    hidden = 16                 # hidden_features
    # For v6e/v7x production runs use compute_dtype=jnp.bfloat16 (bf16 MXU operands,
    # f32 accumulation); float32 here so the strict 1e-4 parity check passes.
    compute_dtype = jnp.float32

    key = jax.random.PRNGKey(0)
    key, kp = jax.random.split(key)
    params = init_params(kp, num_streams, D, hidden)

    xs = []
    for _ in range(num_streams):
        key, kx = jax.random.split(key)
        xs.append(jax.random.normal(kx, (N, L, D), jnp.float32))

    outs = mutual_mha_forward(xs, params, compute_dtype=compute_dtype)
    outs = [jax.block_until_ready(o) for o in outs]

    refs = reference_forward(xs, params)
    for o, r in zip(outs, refs):
        assert o.shape == (N, L, D)
        assert jnp.allclose(o, r, atol=1e-4, rtol=1e-4), "mismatch vs reference"

    print("KERNEL_OK")
</pallas_src>

<mosaic_0001>
module attributes {stable_mosaic.version = 11 : i64} {
  func.func @_mutual_mha_kernel(%arg0: i32, %arg1: memref<2x16x16xf32, #tpu.memory_space<vmem>>, %arg2: memref<2x16x16xf32, #tpu.memory_space<vmem>>, %arg3: memref<2x16x16xf32, #tpu.memory_space<vmem>>, %arg4: memref<2x1x16xf32, #tpu.memory_space<vmem>>, %arg5: memref<2x1x16xf32, #tpu.memory_space<vmem>>, %arg6: memref<2x1x16xf32, #tpu.memory_space<vmem>>, %arg7: memref<2x16x16xf32, #tpu.memory_space<vmem>>, %arg8: memref<2x1x16xf32, #tpu.memory_space<vmem>>, %arg9: memref<1x8x16xf32, #tpu.memory_space<vmem>>, %arg10: memref<1x8x16xf32, #tpu.memory_space<vmem>>, %arg11: memref<1x8x16xf32, #tpu.memory_space<vmem>>, %arg12: memref<1x8x16xf32, #tpu.memory_space<vmem>>) attributes {dimension_semantics = [#tpu.dimension_semantics<parallel>], iteration_bounds = array<i64: 2>, scalar_prefetch = 0 : i64, scratch_operands = 0 : i64, tpu.core_type = #tpu.core_type<tc>, window_params = [{pipeline_mode = #tpu.pipeline_mode<synchronous>, transform_indices = @transform_0, window_bounds = array<i64: 2, 16, 16>}, {pipeline_mode = #tpu.pipeline_mode<synchronous>, transform_indices = @transform_1, window_bounds = array<i64: 2, 16, 16>}, {pipeline_mode = #tpu.pipeline_mode<synchronous>, transform_indices = @transform_2, window_bounds = array<i64: 2, 16, 16>}, {pipeline_mode = #tpu.pipeline_mode<synchronous>, transform_indices = @transform_3, window_bounds = array<i64: 2, 1, 16>}, {pipeline_mode = #tpu.pipeline_mode<synchronous>, transform_indices = @transform_4, window_bounds = array<i64: 2, 1, 16>}, {pipeline_mode = #tpu.pipeline_mode<synchronous>, transform_indices = @transform_5, window_bounds = array<i64: 2, 1, 16>}, {pipeline_mode = #tpu.pipeline_mode<synchronous>, transform_indices = @transform_6, window_bounds = array<i64: 2, 16, 16>}, {pipeline_mode = #tpu.pipeline_mode<synchronous>, transform_indices = @transform_7, window_bounds = array<i64: 2, 1, 16>}, {transform_indices = @transform_8, window_bounds = array<i64: 1, 8, 16>}, {transform_indices = @transform_9, window_bounds = array<i64: 1, 8, 16>}, {transform_indices = @transform_10, window_bounds = array<i64: 1, 8, 16>}, {transform_indices = @transform_11, window_bounds = array<i64: 1, 8, 16>}]} {
    %c0 = arith.constant 0 : index
    %c0_0 = arith.constant 0 : index
    %c0_1 = arith.constant 0 : index
    %0 = vector.load %arg9[%c0, %c0_0, %c0_1] : memref<1x8x16xf32, #tpu.memory_space<vmem>>, vector<1x8x16xf32>
    %1 = vector.shape_cast %0 : vector<1x8x16xf32> to vector<8x16xf32>
    %c0_2 = arith.constant 0 : index
    %c0_3 = arith.constant 0 : index
    %c0_4 = arith.constant 0 : index
    %2 = vector.load %arg10[%c0_2, %c0_3, %c0_4] : memref<1x8x16xf32, #tpu.memory_space<vmem>>, vector<1x8x16xf32>
    %3 = vector.shape_cast %2 : vector<1x8x16xf32> to vector<8x16xf32>
    %4 = vector.shape_cast %1 : vector<8x16xf32> to vector<1x8x16xf32>
    %5 = vector.shape_cast %3 : vector<8x16xf32> to vector<1x8x16xf32>
    %6 = tpu.concatenate %4, %5 in 0 : vector<1x8x16xf32>, vector<1x8x16xf32> -> vector<2x8x16xf32>
    %c0_5 = arith.constant 0 : index
    %c0_6 = arith.constant 0 : index
    %c0_7 = arith.constant 0 : index
    %7 = vector.load %arg1[%c0_5, %c0_6, %c0_7] : memref<2x16x16xf32, #tpu.memory_space<vmem>>, vector<2x16x16xf32>
    %c0_8 = arith.constant 0 : index
    %c0_9 = arith.constant 0 : index
    %c0_10 = arith.constant 0 : index
    %8 = vector.load %arg2[%c0_8, %c0_9, %c0_10] : memref<2x16x16xf32, #tpu.memory_space<vmem>>, vector<2x16x16xf32>
    %c0_11 = arith.constant 0 : index
    %c0_12 = arith.constant 0 : index
    %c0_13 = arith.constant 0 : index
    %9 = vector.load %arg3[%c0_11, %c0_12, %c0_13] : memref<2x16x16xf32, #tpu.memory_space<vmem>>, vector<2x16x16xf32>
    %c0_14 = arith.constant 0 : index
    %c0_15 = arith.constant 0 : index
    %c0_16 = arith.constant 0 : index
    %10 = vector.load %arg7[%c0_14, %c0_15, %c0_16] : memref<2x16x16xf32, #tpu.memory_space<vmem>>, vector<2x16x16xf32>
    "tpu.trace_start"() <{level = 10 : i32, message = "sld,sde->sle"}> : () -> ()
    %cst = arith.constant dense<0.000000e+00> : vector<2x8x16xf32>
    %11 = tpu.matmul %6, %7, %cst {dimension_numbers = #tpu.dot_dimension_numbers<[2], [1], [1], [2], [0, 0, 0, 1, 1, 2], [0], [0]>} : vector<2x8x16xf32>, vector<2x16x16xf32>, vector<2x8x16xf32> -> vector<2x8x16xf32>
    "tpu.trace_stop"() : () -> ()
    %c0_17 = arith.constant 0 : index
    %c0_18 = arith.constant 0 : index
    %c0_19 = arith.constant 0 : index
    %12 = vector.load %arg4[%c0_17, %c0_18, %c0_19] : memref<2x1x16xf32, #tpu.memory_space<vmem>>, vector<2x1x16xf32>
    %13 = vector.broadcast %12 : vector<2x1x16xf32> to vector<2x8x16xf32>
    %14 = arith.addf %11, %13 : vector<2x8x16xf32>
    "tpu.trace_start"() <{level = 10 : i32, message = "sld,sde->sle"}> : () -> ()
    %cst_20 = arith.constant dense<0.000000e+00> : vector<2x8x16xf32>
    %15 = tpu.matmul %6, %8, %cst_20 {dimension_numbers = #tpu.dot_dimension_numbers<[2], [1], [1], [2], [0, 0, 0, 1, 1, 2], [0], [0]>} : vector<2x8x16xf32>, vector<2x16x16xf32>, vector<2x8x16xf32> -> vector<2x8x16xf32>
    "tpu.trace_stop"() : () -> ()
    %c0_21 = arith.constant 0 : index
    %c0_22 = arith.constant 0 : index
    %c0_23 = arith.constant 0 : index
    %16 = vector.load %arg5[%c0_21, %c0_22, %c0_23] : memref<2x1x16xf32, #tpu.memory_space<vmem>>, vector<2x1x16xf32>
    %17 = vector.broadcast %16 : vector<2x1x16xf32> to vector<2x8x16xf32>
    %18 = arith.addf %15, %17 : vector<2x8x16xf32>
    "tpu.trace_start"() <{level = 10 : i32, message = "sld,sde->sle"}> : () -> ()
    %cst_24 = arith.constant dense<0.000000e+00> : vector<2x8x16xf32>
    %19 = tpu.matmul %6, %9, %cst_24 {dimension_numbers = #tpu.dot_dimension_numbers<[2], [1], [1], [2], [0, 0, 0, 1, 1, 2], [0], [0]>} : vector<2x8x16xf32>, vector<2x16x16xf32>, vector<2x8x16xf32> -> vector<2x8x16xf32>
    "tpu.trace_stop"() : () -> ()
    %c0_25 = arith.constant 0 : index
    %c0_26 = arith.constant 0 : index
    %c0_27 = arith.constant 0 : index
    %20 = vector.load %arg6[%c0_25, %c0_26, %c0_27] : memref<2x1x16xf32, #tpu.memory_space<vmem>>, vector<2x1x16xf32>
    %21 = vector.broadcast %20 : vector<2x1x16xf32> to vector<2x8x16xf32>
    %22 = arith.addf %19, %21 : vector<2x8x16xf32>
    %cst_28 = arith.constant dense<0.000000e+00> : vector<8x16xf32>
    %23 = vector.multi_reduction <add>, %14, %cst_28 [0] : vector<2x8x16xf32> to vector<8x16xf32>
    %24 = vector.shape_cast %23 : vector<8x16xf32> to vector<1x8x16xf32>
    %25 = vector.broadcast %24 : vector<1x8x16xf32> to vector<2x8x16xf32>
    %26 = arith.subf %25, %14 : vector<2x8x16xf32>
    "tpu.trace_start"() <{level = 10 : i32, message = "sle,sme->slm"}> : () -> ()
    %cst_29 = arith.constant dense<0.000000e+00> : vector<2x8x8xf32>
    %27 = tpu.matmul %26, %18, %cst_29 {dimension_numbers = #tpu.dot_dimension_numbers<[2], [2], [1], [1], [0, 0, 0, 1, 1, 1], [0], [0]>} : vector<2x8x16xf32>, vector<2x8x16xf32>, vector<2x8x8xf32> -> vector<2x8x8xf32>
    "tpu.trace_stop"() : () -> ()
    %cst_30 = arith.constant 2.500000e-01 : f32
    %28 = vector.broadcast %cst_30 : f32 to vector<2x8x8xf32>
    %29 = arith.mulf %27, %28 : vector<2x8x8xf32>
    %cst_31 = arith.constant dense<0xFF800000> : vector<2x8xf32>
    %30 = vector.multi_reduction <maximumf>, %29, %cst_31 [2] : vector<2x8x8xf32> to vector<2x8xf32>
    %31 = vector.shape_cast %30 : vector<2x8xf32> to vector<2x8x1xf32>
    %32 = vector.broadcast %31 : vector<2x8x1xf32> to vector<2x8x8xf32>
    %33 = arith.subf %29, %32 : vector<2x8x8xf32>
    %34 = math.exp %33 : vector<2x8x8xf32>
    %cst_32 = arith.constant dense<0.000000e+00> : vector<2x8xf32>
    %35 = vector.multi_reduction <add>, %34, %cst_32 [2] : vector<2x8x8xf32> to vector<2x8xf32>
    %36 = vector.shape_cast %35 : vector<2x8xf32> to vector<2x8x1xf32>
    "tpu.trace_start"() <{level = 10 : i32, message = "slm,sme->sle"}> : () -> ()
    %cst_33 = arith.constant dense<0.000000e+00> : vector<2x8x16xf32>
    %37 = tpu.matmul %34, %22, %cst_33 {dimension_numbers = #tpu.dot_dimension_numbers<[2], [1], [1], [2], [0, 0, 0, 1, 1, 2], [0], [0]>} : vector<2x8x8xf32>, vector<2x8x16xf32>, vector<2x8x16xf32> -> vector<2x8x16xf32>
    "tpu.trace_stop"() : () -> ()
    %38 = tpu.reciprocal %36 : vector<2x8x1xf32> -> vector<2x8x1xf32>
    %39 = vector.broadcast %38 : vector<2x8x1xf32> to vector<2x8x16xf32>
    %40 = arith.mulf %37, %39 : vector<2x8x16xf32>
    "tpu.trace_start"() <{level = 10 : i32, message = "sle,sed->sld"}> : () -> ()
    %cst_34 = arith.constant dense<0.000000e+00> : vector<2x8x16xf32>
    %41 = tpu.matmul %40, %10, %cst_34 {dimension_numbers = #tpu.dot_dimension_numbers<[2], [1], [1], [2], [0, 0, 0, 1, 1, 2], [0], [0]>} : vector<2x8x16xf32>, vector<2x16x16xf32>, vector<2x8x16xf32> -> vector<2x8x16xf32>
    "tpu.trace_stop"() : () -> ()
    %c0_35 = arith.constant 0 : index
    %c0_36 = arith.constant 0 : index
    %c0_37 = arith.constant 0 : index
    %42 = vector.load %arg8[%c0_35, %c0_36, %c0_37] : memref<2x1x16xf32, #tpu.memory_space<vmem>>, vector<2x1x16xf32>
    %43 = vector.broadcast %42 : vector<2x1x16xf32> to vector<2x8x16xf32>
    %44 = arith.addf %41, %43 : vector<2x8x16xf32>
    %45 = arith.addf %44, %6 : vector<2x8x16xf32>
    %46 = vector.extract_strided_slice %45 {offsets = [0, 0, 0], sizes = [1, 8, 16], strides = [1, 1, 1]} : vector<2x8x16xf32> to vector<1x8x16xf32>
    %47 = vector.shape_cast %46 : vector<1x8x16xf32> to vector<8x16xf32>
    %c0_38 = arith.constant 0 : index
    %c0_39 = arith.constant 0 : index
    %c0_40 = arith.constant 0 : index
    %48 = vector.load %arg11[%c0_38, %c0_39, %c0_40] : memref<1x8x16xf32, #tpu.memory_space<vmem>>, vector<1x8x16xf32>
    %49 = vector.shape_cast %48 : vector<1x8x16xf32> to vector<8x16xf32>
    %50 = vector.shape_cast %47 : vector<8x16xf32> to vector<1x8x16xf32>
    tpu.vector_store %arg11[%c0_38, %c0_39, %c0_40], %50 {strides = array<i32>} : memref<1x8x16xf32, #tpu.memory_space<vmem>>, vector<1x8x16xf32>,
    %51 = vector.extract_strided_slice %45 {offsets = [1, 0, 0], sizes = [1, 8, 16], strides = [1, 1, 1]} : vector<2x8x16xf32> to vector<1x8x16xf32>
    %52 = vector.shape_cast %51 : vector<1x8x16xf32> to vector<8x16xf32>
    %c0_41 = arith.constant 0 : index
    %c0_42 = arith.constant 0 : index
    %c0_43 = arith.constant 0 : index
    %53 = vector.load %arg12[%c0_41, %c0_42, %c0_43] : memref<1x8x16xf32, #tpu.memory_space<vmem>>, vector<1x8x16xf32>
    %54 = vector.shape_cast %53 : vector<1x8x16xf32> to vector<8x16xf32>
    %55 = vector.shape_cast %52 : vector<8x16xf32> to vector<1x8x16xf32>
    tpu.vector_store %arg12[%c0_41, %c0_42, %c0_43], %55 {strides = array<i32>} : memref<1x8x16xf32, #tpu.memory_space<vmem>>, vector<1x8x16xf32>,
    return
  }
  func.func @transform_0(%arg0: i32) -> (i32, i32, i32) {
    %c0_i32 = arith.constant 0 : i32
    %c0_i32_0 = arith.constant 0 : i32
    %c0_i32_1 = arith.constant 0 : i32
    %c0_i32_2 = arith.constant 0 : i32
    return %c0_i32, %c0_i32_0, %c0_i32_1 : i32, i32, i32
  }
  func.func @transform_1(%arg0: i32) -> (i32, i32, i32) {
    %c0_i32 = arith.constant 0 : i32
    %c0_i32_0 = arith.constant 0 : i32
    %c0_i32_1 = arith.constant 0 : i32
    %c0_i32_2 = arith.constant 0 : i32
    return %c0_i32, %c0_i32_0, %c0_i32_1 : i32, i32, i32
  }
  func.func @transform_2(%arg0: i32) -> (i32, i32, i32) {
    %c0_i32 = arith.constant 0 : i32
    %c0_i32_0 = arith.constant 0 : i32
    %c0_i32_1 = arith.constant 0 : i32
    %c0_i32_2 = arith.constant 0 : i32
    return %c0_i32, %c0_i32_0, %c0_i32_1 : i32, i32, i32
  }
  func.func @transform_3(%arg0: i32) -> (i32, i32, i32) {
    %c0_i32 = arith.constant 0 : i32
    %c0_i32_0 = arith.constant 0 : i32
    %c0_i32_1 = arith.constant 0 : i32
    %c0_i32_2 = arith.constant 0 : i32
    return %c0_i32, %c0_i32_0, %c0_i32_1 : i32, i32, i32
  }
  func.func @transform_4(%arg0: i32) -> (i32, i32, i32) {
    %c0_i32 = arith.constant 0 : i32
    %c0_i32_0 = arith.constant 0 : i32
    %c0_i32_1 = arith.constant 0 : i32
    %c0_i32_2 = arith.constant 0 : i32
    return %c0_i32, %c0_i32_0, %c0_i32_1 : i32, i32, i32
  }
  func.func @transform_5(%arg0: i32) -> (i32, i32, i32) {
    %c0_i32 = arith.constant 0 : i32
    %c0_i32_0 = arith.constant 0 : i32
    %c0_i32_1 = arith.constant 0 : i32
    %c0_i32_2 = arith.constant 0 : i32
    return %c0_i32, %c0_i32_0, %c0_i32_1 : i32, i32, i32
  }
  func.func @transform_6(%arg0: i32) -> (i32, i32, i32) {
    %c0_i32 = arith.constant 0 : i32
    %c0_i32_0 = arith.constant 0 : i32
    %c0_i32_1 = arith.constant 0 : i32
    %c0_i32_2 = arith.constant 0 : i32
    return %c0_i32, %c0_i32_0, %c0_i32_1 : i32, i32, i32
  }
  func.func @transform_7(%arg0: i32) -> (i32, i32, i32) {
    %c0_i32 = arith.constant 0 : i32
    %c0_i32_0 = arith.constant 0 : i32
    %c0_i32_1 = arith.constant 0 : i32
    %c0_i32_2 = arith.constant 0 : i32
    return %c0_i32, %c0_i32_0, %c0_i32_1 : i32, i32, i32
  }
  func.func @transform_8(%arg0: i32) -> (i32, i32, i32) {
    %c0_i32 = arith.constant 0 : i32
    %c0_i32_0 = arith.constant 0 : i32
    %c0_i32_1 = arith.constant 0 : i32
    return %arg0, %c0_i32, %c0_i32_0 : i32, i32, i32
  }
  func.func @transform_9(%arg0: i32) -> (i32, i32, i32) {
    %c0_i32 = arith.constant 0 : i32
    %c0_i32_0 = arith.constant 0 : i32
    %c0_i32_1 = arith.constant 0 : i32
    return %arg0, %c0_i32, %c0_i32_0 : i32, i32, i32
  }
  func.func @transform_10(%arg0: i32) -> (i32, i32, i32) {
    %c0_i32 = arith.constant 0 : i32
    %c0_i32_0 = arith.constant 0 : i32
    %c0_i32_1 = arith.constant 0 : i32
    return %arg0, %c0_i32, %c0_i32_0 : i32, i32, i32
  }
  func.func @transform_11(%arg0: i32) -> (i32, i32, i32) {
    %c0_i32 = arith.constant 0 : i32
    %c0_i32_0 = arith.constant 0 : i32
    %c0_i32_1 = arith.constant 0 : i32
    return %arg0, %c0_i32, %c0_i32_0 : i32, i32, i32
  }
}

</mosaic_0001>

<llo_original>
// kernel: tpu_custom_call.1
$region0: #{tpu_custom_call.1}
  #allocation0 [shape = 'u32[]', space=smem, size = 0x4, offset = 0x4, fixed_abs, tag = 'smem constant byte address 0x4 - core index']
  #allocation1 [shape = 'u32[144,128]{1,0:T(1,128)}', space=vmem, size = 0x12000, scoped, tag = 'internal scratch']
  %s0 = inlined_call_operand.hbm [shape: f32[2,16,16], index: 0, kind: input, shape index: {}]
  %s1 = inlined_call_operand.hbm [shape: f32[2,16,16], index: 1, kind: input, shape index: {}]
  %s2 = inlined_call_operand.hbm [shape: f32[2,16,16], index: 2, kind: input, shape index: {}]
  %s3 = inlined_call_operand.vmem [shape: f32[2,1,16], index: 3, kind: input, shape index: {}]
  %s4 = inlined_call_operand.hbm [shape: f32[2,1,16], index: 4, kind: input, shape index: {}]
  %s5 = inlined_call_operand.hbm [shape: f32[2,1,16], index: 5, kind: input, shape index: {}]
  %s6 = inlined_call_operand.hbm [shape: f32[2,16,16], index: 6, kind: input, shape index: {}]
  %s7 = inlined_call_operand.hbm [shape: f32[2,1,16], index: 7, kind: input, shape index: {}]
  %s8 = inlined_call_operand.vmem [shape: f32[2,8,16], index: 8, kind: input, shape index: {}]
  %s9 = inlined_call_operand.vmem [shape: f32[2,8,16], index: 9, kind: input, shape index: {}]
  %s10 = inlined_call_operand.hbm [shape: f32[2,8,16], index: 10, kind: output, shape index: {0}]
  %s11 = inlined_call_operand.hbm [shape: f32[2,8,16], index: 11, kind: output, shape index: {1}]
  %12 = xla_tuple %s10, %s11
  %s13 = sld [smem:[#allocation0]]
  $region109: #{tpu_custom_call.1} parent=0
    _
  %s15 = ssub.s32 1, %s13
  %s16 = scalar_select 0, %s15, %s13
  $region1: #{tpu_custom_call.1} parent=0
    #allocation2 [shape = 'u8[16384]{0}', space=vmem, size = 0x4000, scoped, tag = 'input window, operand 0, single buffered']
    #allocation3 [shape = 's32[2]{0}', space=sflag, size = 0x8, scoped, tag = 'scoped memory for tpu_custom_call.1']
    #allocation4 [shape = 's32[2]{0}', space=sflag, size = 0x8, scoped, tag = 'scoped memory for tpu_custom_call.1']
    #allocation5 [shape = 'u8[16384]{0}', space=vmem, size = 0x4000, scoped, tag = 'input window, operand 1, single buffered']
    #allocation6 [shape = 's32[1]{0}', space=sflag, size = 0x4, scoped, tag = 'scoped memory for tpu_custom_call.1']
    #allocation7 [shape = 'u8[16384]{0}', space=vmem, size = 0x4000, scoped, tag = 'input window, operand 2, single buffered']
    #allocation8 [shape = 'u8[1024]{0}', space=vmem, size = 0x400, scoped, tag = 'input window, operand 4, single buffered']
    #allocation9 [shape = 's32[1]{0}', space=sflag, size = 0x4, scoped, tag = 'scoped memory for tpu_custom_call.1']
    #allocation10 [shape = 'u8[1024]{0}', space=vmem, size = 0x400, scoped, tag = 'input window, operand 5, single buffered']
    #allocation11 [shape = 'u8[16384]{0}', space=vmem, size = 0x4000, scoped, tag = 'input window, operand 6, single buffered']
    #allocation12 [shape = 's32[1]{0}', space=sflag, size = 0x4, scoped, tag = 'scoped memory for tpu_custom_call.1']
    #allocation13 [shape = 'u8[1024]{0}', space=vmem, size = 0x400, scoped, tag = 'input window, operand 7, single buffered']
    #allocation14 [shape = 'u8[8192]{0}', space=vmem, size = 0x2000, scoped, tag = 'output window, operand 0']
    #allocation15 [shape = 'u8[8192]{0}', space=vmem, size = 0x2000, scoped, tag = 'output window, operand 1']
    #allocation16 [shape = 's32[2]{0}', space=sflag, size = 0x8, scoped, tag = 'scoped memory for tpu_custom_call.1']
    %17 = vsyncpa [#allocation3], 0
    %18 = vsyncpa [#allocation6], 0
    %19 = vsyncpa [#allocation9], 0
    %20 = vsyncpa [#allocation12], 0
    %21 = vsyncpa [#allocation4], 0
    %s22 = scalar_lea.sflag [#allocation4], 1
    %23 = vsyncpa %s22, 0
    %24 = vsyncpa [#allocation16], 0
    %s25 = scalar_lea.sflag [#allocation16], 1
    %26 = vsyncpa %s25, 0
    loop: start=0, step=1, limit=4
    $region2: #{tpu_custom_call.1} parent=1 // loop_pre_header
      _
    $region3: #{tpu_custom_call.1} parent=1 // loop_header
      %s28 = sphi 0, %s32
      %p29 = scmp.ge.s32.totalorder %s28, 4
      %s36 = sphi 0, %s36
      %s38 = sphi 0, %s36
      %s39 = sphi 0, %s38
      %s53 = sphi 0, %s39
      %s57 = sphi 0, %s57
      %s59 = sphi 0, %s57
      %s60 = sphi 0, %s59
      %s74 = sphi 0, %s60
      %s78 = sphi 0, %s78
      %s80 = sphi 0, %s78
      %s81 = sphi 0, %s80
      %s95 = sphi 0, %s81
      %s99 = sphi 0, %s99
      %s101 = sphi 0, %s99
      %s102 = sphi 0, %s101
      %s116 = sphi 0, %s102
      %s120 = sphi 0, %s120
      %s122 = sphi 0, %s120
      %s123 = sphi 0, %s122
      %s137 = sphi 0, %s123
      %s141 = sphi 0, %s141
      %s143 = sphi 0, %s141
      %s144 = sphi 0, %s143
      %s158 = sphi 0, %s144
      %s162 = sphi 0, %s162
      %s164 = sphi 0, %s162
      %s165 = sphi 0, %s164
      %s179 = sphi 0, %s165
      %s183 = sphi 0, %s183
      %s185 = sphi 0, %s183
      %s186 = sphi 0, %s185
      %s200 = sphi 0, %s186
      %s206 = sphi 0, %s208
      %s209 = sphi 0, %s206
      %s210 = sphi 0, %s209
      %s226 = sphi 0, %s210
      %s232 = sphi 0, %s234
      %s235 = sphi 0, %s232
      %s236 = sphi 0, %s235
      %s252 = sphi 0, %s236
      %s258 = sphi 0, %s260
      %s261 = sphi 0, %s258
      %s262 = sphi 0, %s261
      %s278 = sphi 0, %s262
      %s284 = sphi 0, %s286
      %s287 = sphi 0, %s284
      %s288 = sphi 0, %s287
      %s304 = sphi 0, %s288
    $region4: #{tpu_custom_call.1} parent=1 // loop_header_branch
      %31 = sbr.rel (%p29) target = $region8
    $region5: #{tpu_custom_call.1} parent=1 // loop_body
      %s33 = ssub.s32 %s28, 1
      %s34 = ssub.s32 %s28, 2
      %s35 = sadd.s32 %s28, 1
      %s37 = sadd.s32 %s36, 1
      %p40 = scmp.eq.s32.totalorder %s28, 1
      %p41 = scmp.ne.s32.totalorder %s36, %s38
      %p42 = scmp.eq.s32.totalorder %s28, 0
      %p43 = por %p41, %p42
      %p44 = scmp.ne.s32.totalorder %s36, %s38
      %p45 = scmp.eq.s32.totalorder %s33, 1
      %p46 = por %p44, %p45
      %p47 = scmp.ne.s32.totalorder %s38, %s39
      %p48 = scmp.eq.s32.totalorder %s33, 0
      %p49 = por %p47, %p48
      %p50 = scmp.ne.s32.totalorder %s38, %s39
      %p51 = scmp.eq.s32.totalorder %s34, 1
      %p52 = por %p50, %p51
      %p54 = scmp.ne.s32.totalorder %s39, %s53
      %p55 = scmp.eq.s32.totalorder %s34, 0
      %p56 = por %p54, %p55
      %s58 = sadd.s32 %s57, 1
      %p61 = scmp.eq.s32.totalorder %s28, 1
      %p62 = scmp.ne.s32.totalorder %s57, %s59
      %p63 = scmp.eq.s32.totalorder %s28, 0
      %p64 = por %p62, %p63
      %p65 = scmp.ne.s32.totalorder %s57, %s59
      %p66 = scmp.eq.s32.totalorder %s33, 1
      %p67 = por %p65, %p66
      %p68 = scmp.ne.s32.totalorder %s59, %s60
      %p69 = scmp.eq.s32.totalorder %s33, 0
      %p70 = por %p68, %p69
      %p71 = scmp.ne.s32.totalorder %s59, %s60
      %p72 = scmp.eq.s32.totalorder %s34, 1
      %p73 = por %p71, %p72
      %p75 = scmp.ne.s32.totalorder %s60, %s74
      %p76 = scmp.eq.s32.totalorder %s34, 0
      %p77 = por %p75, %p76
      %s79 = sadd.s32 %s78, 1
      %p82 = scmp.eq.s32.totalorder %s28, 1
      %p83 = scmp.ne.s32.totalorder %s78, %s80
      %p84 = scmp.eq.s32.totalorder %s28, 0
      %p85 = por %p83, %p84
      %p86 = scmp.ne.s32.totalorder %s78, %s80
      %p87 = scmp.eq.s32.totalorder %s33, 1
      %p88 = por %p86, %p87
      %p89 = scmp.ne.s32.totalorder %s80, %s81
      %p90 = scmp.eq.s32.totalorder %s33, 0
      %p91 = por %p89, %p90
      %p92 = scmp.ne.s32.totalorder %s80, %s81
      %p93 = scmp.eq.s32.totalorder %s34, 1
      %p94 = por %p92, %p93
      %p96 = scmp.ne.s32.totalorder %s81, %s95
      %p97 = scmp.eq.s32.totalorder %s34, 0
      %p98 = por %p96, %p97
      %s100 = sadd.s32 %s99, 1
      %p103 = scmp.eq.s32.totalorder %s28, 1
      %p104 = scmp.ne.s32.totalorder %s99, %s101
      %p105 = scmp.eq.s32.totalorder %s28, 0
      %p106 = por %p104, %p105
      %p107 = scmp.ne.s32.totalorder %s99, %s101
      %p108 = scmp.eq.s32.totalorder %s33, 1
      %p109 = por %p107, %p108
      %p110 = scmp.ne.s32.totalorder %s101, %s102
      %p111 = scmp.eq.s32.totalorder %s33, 0
      %p112 = por %p110, %p111
      %p113 = scmp.ne.s32.totalorder %s101, %s102
      %p114 = scmp.eq.s32.totalorder %s34, 1
      %p115 = por %p113, %p114
      %p117 = scmp.ne.s32.totalorder %s102, %s116
      %p118 = scmp.eq.s32.totalorder %s34, 0
      %p119 = por %p117, %p118
      %s121 = sadd.s32 %s120, 1
      %p124 = scmp.eq.s32.totalorder %s28, 1
      %p125 = scmp.ne.s32.totalorder %s120, %s122
      %p126 = scmp.eq.s32.totalorder %s28, 0
      %p127 = por %p125, %p126
      %p128 = scmp.ne.s32.totalorder %s120, %s122
      %p129 = scmp.eq.s32.totalorder %s33, 1
      %p130 = por %p128, %p129
      %p131 = scmp.ne.s32.totalorder %s122, %s123
      %p132 = scmp.eq.s32.totalorder %s33, 0
      %p133 = por %p131, %p132
      %p134 = scmp.ne.s32.totalorder %s122, %s123
      %p135 = scmp.eq.s32.totalorder %s34, 1
      %p136 = por %p134, %p135
      %p138 = scmp.ne.s32.totalorder %s123, %s137
      %p139 = scmp.eq.s32.totalorder %s34, 0
      %p140 = por %p138, %p139
      %s142 = sadd.s32 %s141, 1
      %p145 = scmp.eq.s32.totalorder %s28, 1
      %p146 = scmp.ne.s32.totalorder %s141, %s143
      %p147 = scmp.eq.s32.totalorder %s28, 0
      %p148 = por %p146, %p147
      %p149 = scmp.ne.s32.totalorder %s141, %s143
      %p150 = scmp.eq.s32.totalorder %s33, 1
      %p151 = por %p149, %p150
      %p152 = scmp.ne.s32.totalorder %s143, %s144
      %p153 = scmp.eq.s32.totalorder %s33, 0
      %p154 = por %p152, %p153
      %p155 = scmp.ne.s32.totalorder %s143, %s144
      %p156 = scmp.eq.s32.totalorder %s34, 1
      %p157 = por %p155, %p156
      %p159 = scmp.ne.s32.totalorder %s144, %s158
      %p160 = scmp.eq.s32.totalorder %s34, 0
      %p161 = por %p159, %p160
      %s163 = sadd.s32 %s162, 1
      %p166 = scmp.eq.s32.totalorder %s28, 1
      %p167 = scmp.ne.s32.totalorder %s162, %s164
      %p168 = scmp.eq.s32.totalorder %s28, 0
      %p169 = por %p167, %p168
      %p170 = scmp.ne.s32.totalorder %s162, %s164
      %p171 = scmp.eq.s32.totalorder %s33, 1
      %p172 = por %p170, %p171
      %p173 = scmp.ne.s32.totalorder %s164, %s165
      %p174 = scmp.eq.s32.totalorder %s33, 0
      %p175 = por %p173, %p174
      %p176 = scmp.ne.s32.totalorder %s164, %s165
      %p177 = scmp.eq.s32.totalorder %s34, 1
      %p178 = por %p176, %p177
      %p180 = scmp.ne.s32.totalorder %s165, %s179
      %p181 = scmp.eq.s32.totalorder %s34, 0
      %p182 = por %p180, %p181
      %s184 = sadd.s32 %s183, 1
      %p187 = scmp.eq.s32.totalorder %s28, 1
      %p188 = scmp.ne.s32.totalorder %s183, %s185
      %p189 = scmp.eq.s32.totalorder %s28, 0
      %p190 = por %p188, %p189
      %p191 = scmp.ne.s32.totalorder %s183, %s185
      %p192 = scmp.eq.s32.totalorder %s33, 1
      %p193 = por %p191, %p192
      %p194 = scmp.ne.s32.totalorder %s185, %s186
      %p195 = scmp.eq.s32.totalorder %s33, 0
      %p196 = por %p194, %p195
      %p197 = scmp.ne.s32.totalorder %s185, %s186
      %p198 = scmp.eq.s32.totalorder %s34, 1
      %p199 = por %p197, %p198
      %p201 = scmp.ne.s32.totalorder %s186, %s200
      %p202 = scmp.eq.s32.totalorder %s34, 0
      %p203 = por %p201, %p202
      %s204 = ssub.s32 %s28, %s35
      %p205 = scmp.eq.s32.totalorder %s204, 0
      %s207 = sadd.s32 %s206, 1
      %s208 = scalar_select %p205, %s206, %s207
      %p211 = pneg %p205
      %p212 = scmp.eq.s32.totalorder %s28, 1
      %p213 = por %p211, %p212
      %p214 = scmp.ne.s32.totalorder %s206, %s209
      %p215 = scmp.eq.s32.totalorder %s28, 0
      %p216 = por %p214, %p215
      %p217 = scmp.ne.s32.totalorder %s206, %s209
      %p218 = scmp.eq.s32.totalorder %s33, 1
      %p219 = por %p217, %p218
      %p220 = scmp.ne.s32.totalorder %s209, %s210
      %p221 = scmp.eq.s32.totalorder %s33, 0
      %p222 = por %p220, %p221
      %p223 = scmp.ne.s32.totalorder %s209, %s210
      %p224 = scmp.eq.s32.totalorder %s34, 1
      %p225 = por %p223, %p224
      %p227 = scmp.ne.s32.totalorder %s210, %s226
      %p228 = scmp.eq.s32.totalorder %s34, 0
      %p229 = por %p227, %p228
      %s230 = ssub.s32 %s28, %s35
      %p231 = scmp.eq.s32.totalorder %s230, 0
      %s233 = sadd.s32 %s232, 1
      %s234 = scalar_select %p231, %s232, %s233
      %p237 = pneg %p231
      %p238 = scmp.eq.s32.totalorder %s28, 1
      %p239 = por %p237, %p238
      %p240 = scmp.ne.s32.totalorder %s232, %s235
      %p241 = scmp.eq.s32.totalorder %s28, 0
      %p242 = por %p240, %p241
      %p243 = scmp.ne.s32.totalorder %s232, %s235
      %p244 = scmp.eq.s32.totalorder %s33, 1
      %p245 = por %p243, %p244
      %p246 = scmp.ne.s32.totalorder %s235, %s236
      %p247 = scmp.eq.s32.totalorder %s33, 0
      %p248 = por %p246, %p247
      %p249 = scmp.ne.s32.totalorder %s235, %s236
      %p250 = scmp.eq.s32.totalorder %s34, 1
      %p251 = por %p249, %p250
      %p253 = scmp.ne.s32.totalorder %s236, %s252
      %p254 = scmp.eq.s32.totalorder %s34, 0
      %p255 = por %p253, %p254
      %s256 = ssub.s32 %s28, %s35
      %p257 = scmp.eq.s32.totalorder %s256, 0
      %s259 = sadd.s32 %s258, 1
      %s260 = scalar_select %p257, %s258, %s259
      %p263 = pneg %p257
      %p264 = scmp.eq.s32.totalorder %s28, 1
      %p265 = por %p263, %p264
      %p266 = scmp.ne.s32.totalorder %s258, %s261
      %p267 = scmp.eq.s32.totalorder %s28, 0
      %p268 = por %p266, %p267
      %p269 = scmp.ne.s32.totalorder %s258, %s261
      %p270 = scmp.eq.s32.totalorder %s33, 1
      %p271 = por %p269, %p270
      %p272 = scmp.ne.s32.totalorder %s261, %s262
      %p273 = scmp.eq.s32.totalorder %s33, 0
      %p274 = por %p272, %p273
      %p275 = scmp.ne.s32.totalorder %s261, %s262
      %p276 = scmp.eq.s32.totalorder %s34, 1
      %p277 = por %p275, %p276
      %p279 = scmp.ne.s32.totalorder %s262, %s278
      %p280 = scmp.eq.s32.totalorder %s34, 0
      %p281 = por %p279, %p280
      %s282 = ssub.s32 %s28, %s35
      %p283 = scmp.eq.s32.totalorder %s282, 0
      %s285 = sadd.s32 %s284, 1
      %s286 = scalar_select %p283, %s284, %s285
      %p289 = pneg %p283
      %p290 = scmp.eq.s32.totalorder %s28, 1
      %p291 = por %p289, %p290
      %p292 = scmp.ne.s32.totalorder %s284, %s287
      %p293 = scmp.eq.s32.totalorder %s28, 0
      %p294 = por %p292, %p293
      %p295 = scmp.ne.s32.totalorder %s284, %s287
      %p296 = scmp.eq.s32.totalorder %s33, 1
      %p297 = por %p295, %p296
      %p298 = scmp.ne.s32.totalorder %s287, %s288
      %p299 = scmp.eq.s32.totalorder %s33, 0
      %p300 = por %p298, %p299
      %p301 = scmp.ne.s32.totalorder %s287, %s288
      %p302 = scmp.eq.s32.totalorder %s34, 1
      %p303 = por %p301, %p302
      %p305 = scmp.ne.s32.totalorder %s288, %s304
      %p306 = scmp.eq.s32.totalorder %s34, 0
      %p307 = por %p305, %p306
      %p308 = scmp.le.s32.totalorder 1, %s28
      %p309 = scmp.lt.s32.totalorder %s28, 3
      %p310 = pnand %p308, %p309
      %p311 = pneg %p310
      // Predicated region
      $region9: #{tpu_custom_call.1} parent=5 // pred_check
        _
      $region10: #{tpu_custom_call.1} parent=5 // pred_check_branch
        %313 = sbr.rel (%p310) target = $region12
      $region11: #{tpu_custom_call.1} parent=5 // pred_region
        %s314 = ssub.s32 %s28, 1
        // Predicated region
        $region13: #{tpu_custom_call.1} parent=11 // pred_check
          %p315 = pneg %p49
        $region14: #{tpu_custom_call.1} parent=11 // pred_check_branch
          %317 = sbr.rel (%p315) target = $region16
        $region15: #{tpu_custom_call.1} parent=11 // pred_region
          %s319 = ssub.s32 512, 512
          %320 = vsyncadd [#allocation3], %s319
          %s321 = sshll.u32 [#allocation2], 4
          %s322 = int_to_ptr.vmem [resolvable:$true] %s321
          %327 = dma.hbm_to_vmem [thread:$0]  %s0, 512, %s322, [#allocation3], 128, 128, 8
        $region16: #{tpu_custom_call.1} parent=11 // pred_fallthru
          _
        // Predicated region
        $region17: #{tpu_custom_call.1} parent=11 // pred_check
          %p328 = pneg %p70
        $region18: #{tpu_custom_call.1} parent=11 // pred_check_branch
          %330 = sbr.rel (%p328) target = $region20
        $region19: #{tpu_custom_call.1} parent=11 // pred_region
          %s332 = ssub.s32 512, 512
          %333 = vsyncadd [#allocation6], %s332
          %s334 = sshll.u32 [#allocation5], 4
          %s335 = int_to_ptr.vmem [resolvable:$true] %s334
          %340 = dma.hbm_to_vmem [thread:$0]  %s1, 512, %s335, [#allocation6], 128, 128, 8
        $region20: #{tpu_custom_call.1} parent=11 // pred_fallthru
          _
        // Predicated region
        $region21: #{tpu_custom_call.1} parent=11 // pred_check
          %p341 = pneg %p91
        $region22: #{tpu_custom_call.1} parent=11 // pred_check_branch
          %343 = sbr.rel (%p341) target = $region24
        $region23: #{tpu_custom_call.1} parent=11 // pred_region
          %s345 = ssub.s32 512, 512
          %346 = vsyncadd [#allocation6], %s345
          %s347 = sshll.u32 [#allocation7], 4
          %s348 = int_to_ptr.vmem [resolvable:$true] %s347
          %353 = dma.hbm_to_vmem [thread:$0]  %s2, 512, %s348, [#allocation6], 128, 128, 8
        $region24: #{tpu_custom_call.1} parent=11 // pred_fallthru
          _
        // Predicated region
        $region25: #{tpu_custom_call.1} parent=11 // pred_check
          %p354 = pneg %p112
        $region26: #{tpu_custom_call.1} parent=11 // pred_check_branch
          %356 = sbr.rel (%p354) target = $region28
        $region27: #{tpu_custom_call.1} parent=11 // pred_region
          _
        $region28: #{tpu_custom_call.1} parent=11 // pred_fallthru
          _
        // Predicated region
        $region29: #{tpu_custom_call.1} parent=11 // pred_check
          %p357 = pneg %p133
        $region30: #{tpu_custom_call.1} parent=11 // pred_check_branch
          %359 = sbr.rel (%p357) target = $region32
        $region31: #{tpu_custom_call.1} parent=11 // pred_region
          %s361 = ssub.s32 32, 32
          %362 = vsyncadd [#allocation9], %s361
          %s363 = sshll.u32 [#allocation8], 4
          %s364 = int_to_ptr.vmem [resolvable:$true] %s363
          %369 = dma.hbm_to_vmem [thread:$0]  %s4, 32, %s364, [#allocation9], 16, 16, 1
        $region32: #{tpu_custom_call.1} parent=11 // pred_fallthru
          _
        // Predicated region
        $region33: #{tpu_custom_call.1} parent=11 // pred_check
          %p370 = pneg %p154
        $region34: #{tpu_custom_call.1} parent=11 // pred_check_branch
          %372 = sbr.rel (%p370) target = $region36
        $region35: #{tpu_custom_call.1} parent=11 // pred_region
          %s374 = ssub.s32 32, 32
          %375 = vsyncadd [#allocation9], %s374
          %s376 = sshll.u32 [#allocation10], 4
          %s377 = int_to_ptr.vmem [resolvable:$true] %s376
          %382 = dma.hbm_to_vmem [thread:$0]  %s5, 32, %s377, [#allocation9], 16, 16, 1
        $region36: #{tpu_custom_call.1} parent=11 // pred_fallthru
          _
        // Predicated region
        $region37: #{tpu_custom_call.1} parent=11 // pred_check
          %p383 = pneg %p175
        $region38: #{tpu_custom_call.1} parent=11 // pred_check_branch
          %385 = sbr.rel (%p383) target = $region40
        $region39: #{tpu_custom_call.1} parent=11 // pred_region
          %s387 = ssub.s32 512, 512
          %388 = vsyncadd [#allocation12], %s387
          %s389 = sshll.u32 [#allocation11], 4
          %s390 = int_to_ptr.vmem [resolvable:$true] %s389
          %395 = dma.hbm_to_vmem [thread:$0]  %s6, 512, %s390, [#allocation12], 128, 128, 8
        $region40: #{tpu_custom_call.1} parent=11 // pred_fallthru
          _
        // Predicated region
        $region41: #{tpu_custom_call.1} parent=11 // pred_check
          %p396 = pneg %p196
        $region42: #{tpu_custom_call.1} parent=11 // pred_check_branch
          %398 = sbr.rel (%p396) target = $region44
        $region43: #{tpu_custom_call.1} parent=11 // pred_region
          %s400 = ssub.s32 32, 32
          %401 = vsyncadd [#allocation12], %s400
          %s402 = sshll.u32 [#allocation13], 4
          %s403 = int_to_ptr.vmem [resolvable:$true] %s402
          %408 = dma.hbm_to_vmem [thread:$0]  %s7, 32, %s403, [#allocation12], 16, 16, 1
        $region44: #{tpu_custom_call.1} parent=11 // pred_fallthru
          _
      $region12: #{tpu_custom_call.1} parent=5 // pred_fallthru
        _
      %p409 = scmp.lt.s32.totalorder %s28, 2
      // Predicated region
      $region45: #{tpu_custom_call.1} parent=5 // pred_check
        %p410 = pneg %p409
      $region46: #{tpu_custom_call.1} parent=5 // pred_check_branch
        %412 = sbr.rel (%p410) target = $region48
      $region47: #{tpu_custom_call.1} parent=5 // pred_region
        // Predicated region
        $region49: #{tpu_custom_call.1} parent=47 // pred_check
          %p413 = pneg %p216
        $region50: #{tpu_custom_call.1} parent=47 // pred_check_branch
          %415 = sbr.rel (%p413) target = $region52
        $region51: #{tpu_custom_call.1} parent=47 // pred_region
          %p416 = scmp.lt.s32.totalorder %s28, 1
          %s417 = scalar_select %p416, %s28, 1
          %s418 = smul.addr %s417, 8
          %s419 = scalar_lea.vmem %s8, %s418
        $region52: #{tpu_custom_call.1} parent=47 // pred_fallthru
          _
        // Predicated region
        $region53: #{tpu_custom_call.1} parent=47 // pred_check
          %p420 = pneg %p242
        $region54: #{tpu_custom_call.1} parent=47 // pred_check_branch
          %422 = sbr.rel (%p420) target = $region56
        $region55: #{tpu_custom_call.1} parent=47 // pred_region
          %p423 = scmp.lt.s32.totalorder %s28, 1
          %s424 = scalar_select %p423, %s28, 1
          %s425 = smul.addr %s424, 8
          %s426 = scalar_lea.vmem %s9, %s425
        $region56: #{tpu_custom_call.1} parent=47 // pred_fallthru
          _
      $region48: #{tpu_custom_call.1} parent=5 // pred_fallthru
        _
      %p427 = scmp.le.s32.totalorder 1, %s28
      %p428 = scmp.lt.s32.totalorder %s28, 3
      %p429 = pnand %p427, %p428
      %p430 = pneg %p429
      // Predicated region
      $region57: #{tpu_custom_call.1} parent=5 // pred_check
        _
      $region58: #{tpu_custom_call.1} parent=5 // pred_check_branch
        %432 = sbr.rel (%p429) target = $region60
      $region59: #{tpu_custom_call.1} parent=5 // pred_region
        %s433 = ssub.s32 %s28, 1
        // Predicated region
        $region61: #{tpu_custom_call.1} parent=59 // pred_check
          %p434 = pneg %p49
        $region62: #{tpu_custom_call.1} parent=59 // pred_check_branch
          %436 = sbr.rel (%p434) target = $region64
        $region63: #{tpu_custom_call.1} parent=59 // pred_region
          %437 = dma.done [#allocation3], 512
        $region64: #{tpu_custom_call.1} parent=59 // pred_fallthru
          _
        // Predicated region
        $region65: #{tpu_custom_call.1} parent=59 // pred_check
          %p438 = pneg %p70
        $region66: #{tpu_custom_call.1} parent=59 // pred_check_branch
          %440 = sbr.rel (%p438) target = $region68
        $region67: #{tpu_custom_call.1} parent=59 // pred_region
          %441 = dma.done [#allocation6], 512
        $region68: #{tpu_custom_call.1} parent=59 // pred_fallthru
          _
        // Predicated region
        $region69: #{tpu_custom_call.1} parent=59 // pred_check
          %p442 = pneg %p91
        $region70: #{tpu_custom_call.1} parent=59 // pred_check_branch
          %444 = sbr.rel (%p442) target = $region72
        $region71: #{tpu_custom_call.1} parent=59 // pred_region
          %445 = dma.done [#allocation6], 512
        $region72: #{tpu_custom_call.1} parent=59 // pred_fallthru
          _
        // Predicated region
        $region73: #{tpu_custom_call.1} parent=59 // pred_check
          %p446 = pneg %p133
        $region74: #{tpu_custom_call.1} parent=59 // pred_check_branch
          %448 = sbr.rel (%p446) target = $region76
        $region75: #{tpu_custom_call.1} parent=59 // pred_region
          %449 = dma.done [#allocation9], 32
        $region76: #{tpu_custom_call.1} parent=59 // pred_fallthru
          _
        // Predicated region
        $region77: #{tpu_custom_call.1} parent=59 // pred_check
          %p450 = pneg %p154
        $region78: #{tpu_custom_call.1} parent=59 // pred_check_branch
          %452 = sbr.rel (%p450) target = $region80
        $region79: #{tpu_custom_call.1} parent=59 // pred_region
          %453 = dma.done [#allocation9], 32
        $region80: #{tpu_custom_call.1} parent=59 // pred_fallthru
          _
        // Predicated region
        $region81: #{tpu_custom_call.1} parent=59 // pred_check
          %p454 = pneg %p175
        $region82: #{tpu_custom_call.1} parent=59 // pred_check_branch
          %456 = sbr.rel (%p454) target = $region84
        $region83: #{tpu_custom_call.1} parent=59 // pred_region
          %457 = dma.done [#allocation12], 512
        $region84: #{tpu_custom_call.1} parent=59 // pred_fallthru
          _
        // Predicated region
        $region85: #{tpu_custom_call.1} parent=59 // pred_check
          %p458 = pneg %p196
        $region86: #{tpu_custom_call.1} parent=59 // pred_check_branch
          %460 = sbr.rel (%p458) target = $region88
        $region87: #{tpu_custom_call.1} parent=59 // pred_region
          %461 = dma.done [#allocation12], 32
        $region88: #{tpu_custom_call.1} parent=59 // pred_fallthru
          _
        %p462 = pneg %p49
        %p463 = pneg %p46
        %p464 = pneg %p70
        %p465 = pneg %p67
        %p466 = pneg %p91
        %p467 = pneg %p88
        %p468 = pneg %p112
        %p469 = pneg %p109
        %p470 = pneg %p133
        %p471 = pneg %p130
        %p472 = pneg %p154
        %p473 = pneg %p151
        %p474 = pneg %p175
        %p475 = pneg %p172
        %p476 = pneg %p196
        %p477 = pneg %p193
        %p478 = scmp.lt.s32.totalorder %s33, 1
        %s479 = scalar_select %p478, %s33, 1
        %s480 = smul.addr %s479, 8
        %s481 = scalar_lea.vmem %s8, %s480
        %p482 = pneg %p222
        %p483 = pneg %p219
        %p484 = scmp.lt.s32.totalorder %s33, 1
        %s485 = scalar_select %p484, %s33, 1
        %s486 = smul.addr %s485, 8
        %s487 = scalar_lea.vmem %s9, %s486
        %p488 = pneg %p248
        %p489 = pneg %p245
        %p490 = pneg %p274
        %p491 = pneg %p271
        %s492 = sand.u32 %s261, 1
        %s493 = scalar_lea.sflag [#allocation4], %s492
        %s494 = sand.u32 %s261, 1
        %s495 = smul.addr %s494, 8
        %s496 = scalar_lea.vmem [#allocation14], %s495
        %p497 = pneg %p300
        %p498 = pneg %p297
        %s499 = sand.u32 %s287, 1
        %s500 = scalar_lea.sflag [#allocation16], %s499
        %s501 = sand.u32 %s287, 1
        %s502 = smul.addr %s501, 8
        %s503 = scalar_lea.vmem [#allocation15], %s502
        %p504 = scmp.lt.s32.totalorder %s33, 1
        %s505 = scalar_select %p504, %s33, 1
        %s506 = smul.addr %s505, 8
        %s507 = scalar_lea.vmem %s8, %s506
        %p508 = scmp.lt.s32.totalorder %s33, 1
        %s509 = scalar_select %p508, %s33, 1
        %s510 = smul.addr %s509, 8
        %s511 = scalar_lea.vmem %s9, %s510
        %v512 = vld [vmem:[%s507] sm:$0xff]
        %v513 = vld [vmem:[%s511] sm:$0xff]
        %v514 = vld [vmem:[#allocation2] sm:$0xff]
        %v515 = vld [vmem:[#allocation2 + $0x8] sm:$0xff]
        %v516 = vld [vmem:[#allocation2 + $0x10] sm:$0xff]
        %v517 = vld [vmem:[#allocation2 + $0x18] sm:$0xff]
        %v518 = vld [vmem:[#allocation5] sm:$0xff]
        %v519 = vld [vmem:[#allocation5 + $0x8] sm:$0xff]
        %v520 = vld [vmem:[#allocation5 + $0x10] sm:$0xff]
        %v521 = vld [vmem:[#allocation5 + $0x18] sm:$0xff]
        %v522 = vld [vmem:[#allocation7] sm:$0xff]
        %v523 = vld [vmem:[#allocation7 + $0x8] sm:$0xff]
        %v524 = vld [vmem:[#allocation7 + $0x10] sm:$0xff]
        %v525 = vld [vmem:[#allocation7 + $0x18] sm:$0xff]
        %v526 = vld [vmem:[#allocation11] sm:$0xff]
        %v527 = vld [vmem:[#allocation11 + $0x8] sm:$0xff]
        %v528 = vld [vmem:[#allocation11 + $0x10] sm:$0xff]
        %v529 = vld [vmem:[#allocation11 + $0x18] sm:$0xff]
        %v530 = vld [vmem:[%s3] sm:$0x1]
        %v531 = vld [vmem:[%s3 + $0x1] sm:$0x1]
        %v534 = vlaneseq
        %v535 = vshrl.u32 %v534, 7
        %v536 = vsub.s32 0, %v535
        %v537 = vrot.slane %v530, %v536
        %v538 = vlaneseq
        %v539 = vshrl.u32 %v538, 7
        %v540 = vsub.s32 0, %v539
        %v541 = vrot.slane %v531, %v540
        %vm544 = vcmask 130048
        %v546 = vsel %vm544, %v512, 0
        %548 = vmatprep.subr.mxu0 0.0
        %549 = vmatpush1.msra.mxu0 %v514
        %550 = vmatprep.subr.mxu0 0.0
        %551 = vmatpush1.msra.mxu0 %v515
        %552 = vmatprep.subr.mxu0 0.0
        %553 = vmatpush1.msra.mxu0 0.0
        %554 = vmatprep.subr.mxu0 0.0
        %555 = vmatpush1.msra.mxu0 0.0
        %556 = vmatprep.subr.mxu0 0.0
        %557 = vmatpush1.msra.mxu0 0.0
        %558 = vmatprep.subr.mxu0 0.0
        %559 = vmatpush1.msra.mxu0 0.0
        %560 = vmatprep.subr.mxu0 0.0
        %561 = vmatpush1.msra.mxu0 0.0
        %562 = vmatprep.subr.mxu0 0.0
        %563 = vmatpush1.msra.mxu0 0.0
        %564 = vmatprep.subr.mxu0 0.0
        %565 = vmatpush1.msra.mxu0 0.0
        %566 = vmatprep.subr.mxu0 0.0
        %567 = vmatpush1.msra.mxu0 0.0
        %568 = vmatprep.subr.mxu0 0.0
        %569 = vmatpush1.msra.mxu0 0.0
        %570 = vmatprep.subr.mxu0 0.0
        %571 = vmatpush1.msra.mxu0 0.0
        %572 = vmatprep.subr.mxu0 0.0
        %573 = vmatpush1.msra.mxu0 0.0
        %574 = vmatprep.subr.mxu0 0.0
        %575 = vmatpush1.msra.mxu0 0.0
        %576 = vmatprep.subr.mxu0 0.0
        %577 = vmatpush1.msra.mxu0 0.0
        %578 = vmatprep.subr.mxu0 0.0
        %579 = vmatpush1.msra.mxu0 0.0
        %580 = vmatprep.subr.mxu0 0.0
        %581 = vmatpush1.msra.mxu0 0.0
        %582 = vmatprep.subr.mxu0 0.0
        %583 = vmatpush1.msra.mxu0 0.0
        %584 = vmatprep.subr.mxu0 0.0
        %585 = vmatpush1.msra.mxu0 0.0
        %586 = vmatprep.subr.mxu0 0.0
        %587 = vmatpush1.msra.mxu0 0.0
        %588 = vmatprep.subr.mxu0 0.0
        %589 = vmatpush1.msra.mxu0 0.0
        %590 = vmatprep.subr.mxu0 0.0
        %591 = vmatpush1.msra.mxu0 0.0
        %592 = vmatprep.subr.mxu0 0.0
        %593 = vmatpush1.msra.mxu0 0.0
        %594 = vmatprep.subr.mxu0 0.0
        %595 = vmatpush1.msra.mxu0 0.0
        %596 = vmatprep.subr.mxu0 0.0
        %597 = vmatpush1.msra.mxu0 0.0
        %598 = vmatprep.subr.mxu0 0.0
        %599 = vmatpush1.msra.mxu0 0.0
        %600 = vmatprep.subr.mxu0 0.0
        %601 = vmatpush1.msra.mxu0 0.0
        %602 = vmatprep.subr.mxu0 0.0
        %603 = vmatpush1.msra.mxu0 0.0
        %604 = vmatprep.subr.mxu0 0.0
        %605 = vmatpush1.msra.mxu0 0.0
        %606 = vmatprep.subr.mxu0 0.0
        %607 = vmatpush1.msra.mxu0 0.0
        %608 = vmatprep.subr.mxu0 0.0
        %609 = vmatpush1.msra.mxu0 0.0
        %610 = vmatprep.subr.mxu0 0.0
        %611 = vmatpush1.msra.mxu0 0.0
        %612 = vmatprep.mubr.f32.mxu0 0.0
        %613 = vmatmul.mubr.f32.gmra.mrb[0].mxu0 %v546
        %v614 = vpop.f32.mrb[0].mxu0
        %v615 = vadd.f32 %v537, %v614
        %v616 = vpop.f32.mrb[0].mxu0
        %617 = vdwg.mxu0
        %v619 = vsel %vm544, %v513, 0
        %621 = vmatprep.subr.mxu0 0.0
        %622 = vmatpush1.msra.mxu0 %v516
        %623 = vmatprep.subr.mxu0 0.0
        %624 = vmatpush1.msra.mxu0 %v517
        %625 = vmatprep.subr.mxu0 0.0
        %626 = vmatpush1.msra.mxu0 0.0
        %627 = vmatprep.subr.mxu0 0.0
        %628 = vmatpush1.msra.mxu0 0.0
        %629 = vmatprep.subr.mxu0 0.0
        %630 = vmatpush1.msra.mxu0 0.0
        %631 = vmatprep.subr.mxu0 0.0
        %632 = vmatpush1.msra.mxu0 0.0
        %633 = vmatprep.subr.mxu0 0.0
        %634 = vmatpush1.msra.mxu0 0.0
        %635 = vmatprep.subr.mxu0 0.0
        %636 = vmatpush1.msra.mxu0 0.0
        %637 = vmatprep.subr.mxu0 0.0
        %638 = vmatpush1.msra.mxu0 0.0
        %639 = vmatprep.subr.mxu0 0.0
        %640 = vmatpush1.msra.mxu0 0.0
        %641 = vmatprep.subr.mxu0 0.0
        %642 = vmatpush1.msra.mxu0 0.0
        %643 = vmatprep.subr.mxu0 0.0
        %644 = vmatpush1.msra.mxu0 0.0
        %645 = vmatprep.subr.mxu0 0.0
        %646 = vmatpush1.msra.mxu0 0.0
        %647 = vmatprep.subr.mxu0 0.0
        %648 = vmatpush1.msra.mxu0 0.0
        %649 = vmatprep.subr.mxu0 0.0
        %650 = vmatpush1.msra.mxu0 0.0
        %651 = vmatprep.subr.mxu0 0.0
        %652 = vmatpush1.msra.mxu0 0.0
        %653 = vmatprep.subr.mxu0 0.0
        %654 = vmatpush1.msra.mxu0 0.0
        %655 = vmatprep.subr.mxu0 0.0
        %656 = vmatpush1.msra.mxu0 0.0
        %657 = vmatprep.subr.mxu0 0.0
        %658 = vmatpush1.msra.mxu0 0.0
        %659 = vmatprep.subr.mxu0 0.0
        %660 = vmatpush1.msra.mxu0 0.0
        %661 = vmatprep.subr.mxu0 0.0
        %662 = vmatpush1.msra.mxu0 0.0
        %663 = vmatprep.subr.mxu0 0.0
        %664 = vmatpush1.msra.mxu0 0.0
        %665 = vmatprep.subr.mxu0 0.0
        %666 = vmatpush1.msra.mxu0 0.0
        %667 = vmatprep.subr.mxu0 0.0
        %668 = vmatpush1.msra.mxu0 0.0
        %669 = vmatprep.subr.mxu0 0.0
        %670 = vmatpush1.msra.mxu0 0.0
        %671 = vmatprep.subr.mxu0 0.0
        %672 = vmatpush1.msra.mxu0 0.0
        %673 = vmatprep.subr.mxu0 0.0
        %674 = vmatpush1.msra.mxu0 0.0
        %675 = vmatprep.subr.mxu0 0.0
        %676 = vmatpush1.msra.mxu0 0.0
        %677 = vmatprep.subr.mxu0 0.0
        %678 = vmatpush1.msra.mxu0 0.0
        %679 = vmatprep.subr.mxu0 0.0
        %680 = vmatpush1.msra.mxu0 0.0
        %681 = vmatprep.subr.mxu0 0.0
        %682 = vmatpush1.msra.mxu0 0.0
        %683 = vmatprep.subr.mxu0 0.0
        %684 = vmatpush1.msra.mxu0 0.0
        %685 = vmatprep.mubr.f32.mxu0 0.0
        %686 = vmatmul.mubr.f32.gmra.mrb[0].mxu0 %v619
        %v687 = vpop.f32.mrb[0].mxu0
        %v688 = vadd.f32 %v541, %v687
        %v689 = vpop.f32.mrb[0].mxu0
        %690 = vdwg.mxu0
        %v691 = vld [vmem:[#allocation8] sm:$0x1]
        %v692 = vld [vmem:[#allocation8 + $0x1] sm:$0x1]
        %v695 = vlaneseq
        %v696 = vshrl.u32 %v695, 7
        %v697 = vsub.s32 0, %v696
        %v698 = vrot.slane %v691, %v697
        %v699 = vlaneseq
        %v700 = vshrl.u32 %v699, 7
        %v701 = vsub.s32 0, %v700
        %v702 = vrot.slane %v692, %v701
        %705 = vmatprep.subr.mxu0 0.0
        %706 = vmatpush1.msra.mxu0 %v518
        %707 = vmatprep.subr.mxu0 0.0
        %708 = vmatpush1.msra.mxu0 %v519
        %709 = vmatprep.subr.mxu0 0.0
        %710 = vmatpush1.msra.mxu0 0.0
        %711 = vmatprep.subr.mxu0 0.0
        %712 = vmatpush1.msra.mxu0 0.0
        %713 = vmatprep.subr.mxu0 0.0
        %714 = vmatpush1.msra.mxu0 0.0
        %715 = vmatprep.subr.mxu0 0.0
        %716 = vmatpush1.msra.mxu0 0.0
        %717 = vmatprep.subr.mxu0 0.0
        %718 = vmatpush1.msra.mxu0 0.0
        %719 = vmatprep.subr.mxu0 0.0
        %720 = vmatpush1.msra.mxu0 0.0
        %721 = vmatprep.subr.mxu0 0.0
        %722 = vmatpush1.msra.mxu0 0.0
        %723 = vmatprep.subr.mxu0 0.0
        %724 = vmatpush1.msra.mxu0 0.0
        %725 = vmatprep.subr.mxu0 0.0
        %726 = vmatpush1.msra.mxu0 0.0
        %727 = vmatprep.subr.mxu0 0.0
        %728 = vmatpush1.msra.mxu0 0.0
        %729 = vmatprep.subr.mxu0 0.0
        %730 = vmatpush1.msra.mxu0 0.0
        %731 = vmatprep.subr.mxu0 0.0
        %732 = vmatpush1.msra.mxu0 0.0
        %733 = vmatprep.subr.mxu0 0.0
        %734 = vmatpush1.msra.mxu0 0.0
        %735 = vmatprep.subr.mxu0 0.0
        %736 = vmatpush1.msra.mxu0 0.0
        %737 = vmatprep.subr.mxu0 0.0
        %738 = vmatpush1.msra.mxu0 0.0
        %739 = vmatprep.subr.mxu0 0.0
        %740 = vmatpush1.msra.mxu0 0.0
        %741 = vmatprep.subr.mxu0 0.0
        %742 = vmatpush1.msra.mxu0 0.0
        %743 = vmatprep.subr.mxu0 0.0
        %744 = vmatpush1.msra.mxu0 0.0
        %745 = vmatprep.subr.mxu0 0.0
        %746 = vmatpush1.msra.mxu0 0.0
        %747 = vmatprep.subr.mxu0 0.0
        %748 = vmatpush1.msra.mxu0 0.0
        %749 = vmatprep.subr.mxu0 0.0
        %750 = vmatpush1.msra.mxu0 0.0
        %751 = vmatprep.subr.mxu0 0.0
        %752 = vmatpush1.msra.mxu0 0.0
        %753 = vmatprep.subr.mxu0 0.0
        %754 = vmatpush1.msra.mxu0 0.0
        %755 = vmatprep.subr.mxu0 0.0
        %756 = vmatpush1.msra.mxu0 0.0
        %757 = vmatprep.subr.mxu0 0.0
        %758 = vmatpush1.msra.mxu0 0.0
        %759 = vmatprep.subr.mxu0 0.0
        %760 = vmatpush1.msra.mxu0 0.0
        %761 = vmatprep.subr.mxu0 0.0
        %762 = vmatpush1.msra.mxu0 0.0
        %763 = vmatprep.subr.mxu0 0.0
        %764 = vmatpush1.msra.mxu0 0.0
        %765 = vmatprep.subr.mxu0 0.0
        %766 = vmatpush1.msra.mxu0 0.0
        %767 = vmatprep.subr.mxu0 0.0
        %768 = vmatpush1.msra.mxu0 0.0
        %769 = vmatprep.mubr.f32.mxu0 0.0
        %770 = vmatmul.mubr.f32.gmra.mrb[0].mxu0 %v546
        %v771 = vpop.f32.mrb[0].mxu0
        %v772 = vadd.f32 %v698, %v771
        %v773 = vpop.f32.mrb[0].mxu0
        %774 = vdwg.mxu0
        %775 = vmatprep.subr.mxu0 0.0
        %776 = vmatpush1.msra.mxu0 %v520
        %777 = vmatprep.subr.mxu0 0.0
        %778 = vmatpush1.msra.mxu0 %v521
        %779 = vmatprep.subr.mxu0 0.0
        %780 = vmatpush1.msra.mxu0 0.0
        %781 = vmatprep.subr.mxu0 0.0
        %782 = vmatpush1.msra.mxu0 0.0
        %783 = vmatprep.subr.mxu0 0.0
        %784 = vmatpush1.msra.mxu0 0.0
        %785 = vmatprep.subr.mxu0 0.0
        %786 = vmatpush1.msra.mxu0 0.0
        %787 = vmatprep.subr.mxu0 0.0
        %788 = vmatpush1.msra.mxu0 0.0
        %789 = vmatprep.subr.mxu0 0.0
        %790 = vmatpush1.msra.mxu0 0.0
        %791 = vmatprep.subr.mxu0 0.0
        %792 = vmatpush1.msra.mxu0 0.0
        %793 = vmatprep.subr.mxu0 0.0
        %794 = vmatpush1.msra.mxu0 0.0
        %795 = vmatprep.subr.mxu0 0.0
        %796 = vmatpush1.msra.mxu0 0.0
        %797 = vmatprep.subr.mxu0 0.0
        %798 = vmatpush1.msra.mxu0 0.0
        %799 = vmatprep.subr.mxu0 0.0
        %800 = vmatpush1.msra.mxu0 0.0
        %801 = vmatprep.subr.mxu0 0.0
        %802 = vmatpush1.msra.mxu0 0.0
        %803 = vmatprep.subr.mxu0 0.0
        %804 = vmatpush1.msra.mxu0 0.0
        %805 = vmatprep.subr.mxu0 0.0
        %806 = vmatpush1.msra.mxu0 0.0
        %807 = vmatprep.subr.mxu0 0.0
        %808 = vmatpush1.msra.mxu0 0.0
        %809 = vmatprep.subr.mxu0 0.0
        %810 = vmatpush1.msra.mxu0 0.0
        %811 = vmatprep.subr.mxu0 0.0
        %812 = vmatpush1.msra.mxu0 0.0
        %813 = vmatprep.subr.mxu0 0.0
        %814 = vmatpush1.msra.mxu0 0.0
        %815 = vmatprep.subr.mxu0 0.0
        %816 = vmatpush1.msra.mxu0 0.0
        %817 = vmatprep.subr.mxu0 0.0
        %818 = vmatpush1.msra.mxu0 0.0
        %819 = vmatprep.subr.mxu0 0.0
        %820 = vmatpush1.msra.mxu0 0.0
        %821 = vmatprep.subr.mxu0 0.0
        %822 = vmatpush1.msra.mxu0 0.0
        %823 = vmatprep.subr.mxu0 0.0
        %824 = vmatpush1.msra.mxu0 0.0
        %825 = vmatprep.subr.mxu0 0.0
        %826 = vmatpush1.msra.mxu0 0.0
        %827 = vmatprep.subr.mxu0 0.0
        %828 = vmatpush1.msra.mxu0 0.0
        %829 = vmatprep.subr.mxu0 0.0
        %830 = vmatpush1.msra.mxu0 0.0
        %831 = vmatprep.subr.mxu0 0.0
        %832 = vmatpush1.msra.mxu0 0.0
        %833 = vmatprep.subr.mxu0 0.0
        %834 = vmatpush1.msra.mxu0 0.0
        %835 = vmatprep.subr.mxu0 0.0
        %836 = vmatpush1.msra.mxu0 0.0
        %837 = vmatprep.subr.mxu0 0.0
        %838 = vmatpush1.msra.mxu0 0.0
        %839 = vmatprep.mubr.f32.mxu0 0.0
        %840 = vmatmul.mubr.f32.gmra.mrb[0].mxu0 %v619
        %v841 = vpop.f32.mrb[0].mxu0
        %v842 = vadd.f32 %v702, %v841
        %v843 = vpop.f32.mrb[0].mxu0
        %844 = vdwg.mxu0
        %v845 = vld [vmem:[#allocation10] sm:$0x1]
        %v846 = vld [vmem:[#allocation10 + $0x1] sm:$0x1]
        %v849 = vlaneseq
        %v850 = vshrl.u32 %v849, 7
        %v851 = vsub.s32 0, %v850
        %v852 = vrot.slane %v845, %v851
        %v853 = vlaneseq
        %v854 = vshrl.u32 %v853, 7
        %v855 = vsub.s32 0, %v854
        %v856 = vrot.slane %v846, %v855
        %859 = vmatprep.subr.mxu0 0.0
        %860 = vmatpush1.msra.mxu0 %v522
        %861 = vmatprep.subr.mxu0 0.0
        %862 = vmatpush1.msra.mxu0 %v523
        %863 = vmatprep.subr.mxu0 0.0
        %864 = vmatpush1.msra.mxu0 0.0
        %865 = vmatprep.subr.mxu0 0.0
        %866 = vmatpush1.msra.mxu0 0.0
        %867 = vmatprep.subr.mxu0 0.0
        %868 = vmatpush1.msra.mxu0 0.0
        %869 = vmatprep.subr.mxu0 0.0
        %870 = vmatpush1.msra.mxu0 0.0
        %871 = vmatprep.subr.mxu0 0.0
        %872 = vmatpush1.msra.mxu0 0.0
        %873 = vmatprep.subr.mxu0 0.0
        %874 = vmatpush1.msra.mxu0 0.0
        %875 = vmatprep.subr.mxu0 0.0
        %876 = vmatpush1.msra.mxu0 0.0
        %877 = vmatprep.subr.mxu0 0.0
        %878 = vmatpush1.msra.mxu0 0.0
        %879 = vmatprep.subr.mxu0 0.0
        %880 = vmatpush1.msra.mxu0 0.0
        %881 = vmatprep.subr.mxu0 0.0
        %882 = vmatpush1.msra.mxu0 0.0
        %883 = vmatprep.subr.mxu0 0.0
        %884 = vmatpush1.msra.mxu0 0.0
        %885 = vmatprep.subr.mxu0 0.0
        %886 = vmatpush1.msra.mxu0 0.0
        %887 = vmatprep.subr.mxu0 0.0
        %888 = vmatpush1.msra.mxu0 0.0
        %889 = vmatprep.subr.mxu0 0.0
        %890 = vmatpush1.msra.mxu0 0.0
        %891 = vmatprep.subr.mxu0 0.0
        %892 = vmatpush1.msra.mxu0 0.0
        %893 = vmatprep.subr.mxu0 0.0
        %894 = vmatpush1.msra.mxu0 0.0
        %895 = vmatprep.subr.mxu0 0.0
        %896 = vmatpush1.msra.mxu0 0.0
        %897 = vmatprep.subr.mxu0 0.0
        %898 = vmatpush1.msra.mxu0 0.0
        %899 = vmatprep.subr.mxu0 0.0
        %900 = vmatpush1.msra.mxu0 0.0
        %901 = vmatprep.subr.mxu0 0.0
        %902 = vmatpush1.msra.mxu0 0.0
        %903 = vmatprep.subr.mxu0 0.0
        %904 = vmatpush1.msra.mxu0 0.0
        %905 = vmatprep.subr.mxu0 0.0
        %906 = vmatpush1.msra.mxu0 0.0
        %907 = vmatprep.subr.mxu0 0.0
        %908 = vmatpush1.msra.mxu0 0.0
        %909 = vmatprep.subr.mxu0 0.0
        %910 = vmatpush1.msra.mxu0 0.0
        %911 = vmatprep.subr.mxu0 0.0
        %912 = vmatpush1.msra.mxu0 0.0
        %913 = vmatprep.subr.mxu0 0.0
        %914 = vmatpush1.msra.mxu0 0.0
        %915 = vmatprep.subr.mxu0 0.0
        %916 = vmatpush1.msra.mxu0 0.0
        %917 = vmatprep.subr.mxu0 0.0
        %918 = vmatpush1.msra.mxu0 0.0
        %919 = vmatprep.subr.mxu0 0.0
        %920 = vmatpush1.msra.mxu0 0.0
        %921 = vmatprep.subr.mxu0 0.0
        %922 = vmatpush1.msra.mxu0 0.0
        %923 = vmatprep.mubr.f32.mxu0 0.0
        %924 = vmatmul.mubr.f32.gmra.mrb[0].mxu0 %v546
        %v925 = vpop.f32.mrb[0].mxu0
        %v926 = vadd.f32 %v852, %v925
        %v927 = vpop.f32.mrb[0].mxu0
        %928 = vdwg.mxu0
        %929 = vmatprep.subr.mxu0 0.0
        %930 = vmatpush1.msra.mxu0 %v524
        %931 = vmatprep.subr.mxu0 0.0
        %932 = vmatpush1.msra.mxu0 %v525
        %933 = vmatprep.subr.mxu0 0.0
        %934 = vmatpush1.msra.mxu0 0.0
        %935 = vmatprep.subr.mxu0 0.0
        %936 = vmatpush1.msra.mxu0 0.0
        %937 = vmatprep.subr.mxu0 0.0
        %938 = vmatpush1.msra.mxu0 0.0
        %939 = vmatprep.subr.mxu0 0.0
        %940 = vmatpush1.msra.mxu0 0.0
        %941 = vmatprep.subr.mxu0 0.0
        %942 = vmatpush1.msra.mxu0 0.0
        %943 = vmatprep.subr.mxu0 0.0
        %944 = vmatpush1.msra.mxu0 0.0
        %945 = vmatprep.subr.mxu0 0.0
        %946 = vmatpush1.msra.mxu0 0.0
        %947 = vmatprep.subr.mxu0 0.0
        %948 = vmatpush1.msra.mxu0 0.0
        %949 = vmatprep.subr.mxu0 0.0
        %950 = vmatpush1.msra.mxu0 0.0
        %951 = vmatprep.subr.mxu0 0.0
        %952 = vmatpush1.msra.mxu0 0.0
        %953 = vmatprep.subr.mxu0 0.0
        %954 = vmatpush1.msra.mxu0 0.0
        %955 = vmatprep.subr.mxu0 0.0
        %956 = vmatpush1.msra.mxu0 0.0
        %957 = vmatprep.subr.mxu0 0.0
        %958 = vmatpush1.msra.mxu0 0.0
        %959 = vmatprep.subr.mxu0 0.0
        %960 = vmatpush1.msra.mxu0 0.0
        %961 = vmatprep.subr.mxu0 0.0
        %962 = vmatpush1.msra.mxu0 0.0
        %963 = vmatprep.subr.mxu0 0.0
        %964 = vmatpush1.msra.mxu0 0.0
        %965 = vmatprep.subr.mxu0 0.0
        %966 = vmatpush1.msra.mxu0 0.0
        %967 = vmatprep.subr.mxu0 0.0
        %968 = vmatpush1.msra.mxu0 0.0
        %969 = vmatprep.subr.mxu0 0.0
        %970 = vmatpush1.msra.mxu0 0.0
        %971 = vmatprep.subr.mxu0 0.0
        %972 = vmatpush1.msra.mxu0 0.0
        %973 = vmatprep.subr.mxu0 0.0
        %974 = vmatpush1.msra.mxu0 0.0
        %975 = vmatprep.subr.mxu0 0.0
        %976 = vmatpush1.msra.mxu0 0.0
        %977 = vmatprep.subr.mxu0 0.0
        %978 = vmatpush1.msra.mxu0 0.0
        %979 = vmatprep.subr.mxu0 0.0
        %980 = vmatpush1.msra.mxu0 0.0
        %981 = vmatprep.subr.mxu0 0.0
        %982 = vmatpush1.msra.mxu0 0.0
        %983 = vmatprep.subr.mxu0 0.0
        %984 = vmatpush1.msra.mxu0 0.0
        %985 = vmatprep.subr.mxu0 0.0
        %986 = vmatpush1.msra.mxu0 0.0
        %987 = vmatprep.subr.mxu0 0.0
        %988 = vmatpush1.msra.mxu0 0.0
        %989 = vmatprep.subr.mxu0 0.0
        %990 = vmatpush1.msra.mxu0 0.0
        %991 = vmatprep.subr.mxu0 0.0
        %992 = vmatpush1.msra.mxu0 0.0
        %993 = vmatprep.mubr.f32.mxu0 0.0
        %994 = vmatmul.mubr.f32.gmra.mrb[0].mxu0 %v619
        %v995 = vpop.f32.mrb[0].mxu0
        %v996 = vadd.f32 %v856, %v995
        %v997 = vpop.f32.mrb[0].mxu0
        %998 = vdwg.mxu0
        %v999 = vsel %vm544, %v615, 0.0
        %v1000 = vsel %vm544, %v688, 0.0
        %v1001 = vadd.f32 %v999, %v1000
        %v1002 = vsub.f32 %v1001, %v615
        %v1003 = vsub.f32 %v1001, %v688
        %v1005 = vsel %vm544, %v1002, 0
        %v1008 = vsel %vm544, %v772, 0
        %1010 = vmatprep.subr.mxu0 0.0
        %1011 = vmatpush1.xpose.msra.mxu0 %v1008
        %1012 = vmatprep.subr.mxu0 0.0
        %1013 = vmatpush1.xpose.msra.mxu0 0.0
        %1014 = vmatprep.subr.mxu0 0.0
        %1015 = vmatpush1.xpose.msra.mxu0 0.0
        %1016 = vmatprep.subr.mxu0 0.0
        %1017 = vmatpush1.xpose.msra.mxu0 0.0
        %1018 = vmatprep.subr.mxu0 0.0
        %1019 = vmatpush1.xpose.msra.mxu0 0.0
        %1020 = vmatprep.subr.mxu0 0.0
        %1021 = vmatpush1.xpose.msra.mxu0 0.0
        %1022 = vmatprep.subr.mxu0 0.0
        %1023 = vmatpush1.xpose.msra.mxu0 0.0
        %1024 = vmatprep.subr.mxu0 0.0
        %1025 = vmatpush1.xpose.msra.mxu0 0.0
        %1026 = vmatprep.subr.mxu0 0.0
        %1027 = vmatpush1.xpose.msra.mxu0 0.0
        %1028 = vmatprep.subr.mxu0 0.0
        %1029 = vmatpush1.xpose.msra.mxu0 0.0
        %1030 = vmatprep.subr.mxu0 0.0
        %1031 = vmatpush1.xpose.msra.mxu0 0.0
        %1032 = vmatprep.subr.mxu0 0.0
        %1033 = vmatpush1.xpose.msra.mxu0 0.0
        %1034 = vmatprep.subr.mxu0 0.0
        %1035 = vmatpush1.xpose.msra.mxu0 0.0
        %1036 = vmatprep.subr.mxu0 0.0
        %1037 = vmatpush1.xpose.msra.mxu0 0.0
        %1038 = vmatprep.subr.mxu0 0.0
        %1039 = vmatpush1.xpose.msra.mxu0 0.0
        %1040 = vmatprep.subr.mxu0 0.0
        %1041 = vmatpush1.xpose.msra.mxu0 0.0
        %1042 = vmatprep.subr.mxu0 0.0
        %1043 = vmatpush1.xpose.msra.mxu0 0.0
        %1044 = vmatprep.subr.mxu0 0.0
        %1045 = vmatpush1.xpose.msra.mxu0 0.0
        %1046 = vmatprep.subr.mxu0 0.0
        %1047 = vmatpush1.xpose.msra.mxu0 0.0
        %1048 = vmatprep.subr.mxu0 0.0
        %1049 = vmatpush1.xpose.msra.mxu0 0.0
        %1050 = vmatprep.subr.mxu0 0.0
        %1051 = vmatpush1.xpose.msra.mxu0 0.0
        %1052 = vmatprep.subr.mxu0 0.0
        %1053 = vmatpush1.xpose.msra.mxu0 0.0
        %1054 = vmatprep.subr.mxu0 0.0
        %1055 = vmatpush1.xpose.msra.mxu0 0.0
        %1056 = vmatprep.subr.mxu0 0.0
        %1057 = vmatpush1.xpose.msra.mxu0 0.0
        %1058 = vmatprep.subr.mxu0 0.0
        %1059 = vmatpush1.xpose.msra.mxu0 0.0
        %1060 = vmatprep.subr.mxu0 0.0
        %1061 = vmatpush1.xpose.msra.mxu0 0.0
        %1062 = vmatprep.subr.mxu0 0.0
        %1063 = vmatpush1.xpose.msra.mxu0 0.0
        %1064 = vmatprep.subr.mxu0 0.0
        %1065 = vmatpush1.xpose.msra.mxu0 0.0
        %1066 = vmatprep.subr.mxu0 0.0
        %1067 = vmatpush1.xpose.msra.mxu0 0.0
        %1068 = vmatprep.subr.mxu0 0.0
        %1069 = vmatpush1.xpose.msra.mxu0 0.0
        %1070 = vmatprep.subr.mxu0 0.0
        %1071 = vmatpush1.xpose.msra.mxu0 0.0
        %1072 = vmatprep.subr.mxu0 0.0
        %1073 = vmatpush1.xpose.msra.mxu0 0.0
        %1074 = vmatprep.mubr.f32.mxu0 0.0
        %1075 = vmatmul.mubr.f32.gmra.mrb[0].mxu0 %v1005
        %v1076 = vpop.f32.mrb[0].mxu0
        %v1077 = vadd.f32 0.0, %v1076
        %v1078 = vpop.f32.mrb[0].mxu0
        %1079 = vdwg.mxu0
        %v1081 = vsel %vm544, %v1003, 0
        %v1084 = vsel %vm544, %v842, 0
        %1086 = vmatprep.subr.mxu0 0.0
        %1087 = vmatpush1.xpose.msra.mxu0 %v1084
        %1088 = vmatprep.subr.mxu0 0.0
        %1089 = vmatpush1.xpose.msra.mxu0 0.0
        %1090 = vmatprep.subr.mxu0 0.0
        %1091 = vmatpush1.xpose.msra.mxu0 0.0
        %1092 = vmatprep.subr.mxu0 0.0
        %1093 = vmatpush1.xpose.msra.mxu0 0.0
        %1094 = vmatprep.subr.mxu0 0.0
        %1095 = vmatpush1.xpose.msra.mxu0 0.0
        %1096 = vmatprep.subr.mxu0 0.0
        %1097 = vmatpush1.xpose.msra.mxu0 0.0
        %1098 = vmatprep.subr.mxu0 0.0
        %1099 = vmatpush1.xpose.msra.mxu0 0.0
        %1100 = vmatprep.subr.mxu0 0.0
        %1101 = vmatpush1.xpose.msra.mxu0 0.0
        %1102 = vmatprep.subr.mxu0 0.0
        %1103 = vmatpush1.xpose.msra.mxu0 0.0
        %1104 = vmatprep.subr.mxu0 0.0
        %1105 = vmatpush1.xpose.msra.mxu0 0.0
        %1106 = vmatprep.subr.mxu0 0.0
        %1107 = vmatpush1.xpose.msra.mxu0 0.0
        %1108 = vmatprep.subr.mxu0 0.0
        %1109 = vmatpush1.xpose.msra.mxu0 0.0
        %1110 = vmatprep.subr.mxu0 0.0
        %1111 = vmatpush1.xpose.msra.mxu0 0.0
        %1112 = vmatprep.subr.mxu0 0.0
        %1113 = vmatpush1.xpose.msra.mxu0 0.0
        %1114 = vmatprep.subr.mxu0 0.0
        %1115 = vmatpush1.xpose.msra.mxu0 0.0
        %1116 = vmatprep.subr.mxu0 0.0
        %1117 = vmatpush1.xpose.msra.mxu0 0.0
        %1118 = vmatprep.subr.mxu0 0.0
        %1119 = vmatpush1.xpose.msra.mxu0 0.0
        %1120 = vmatprep.subr.mxu0 0.0
        %1121 = vmatpush1.xpose.msra.mxu0 0.0
        %1122 = vmatprep.subr.mxu0 0.0
        %1123 = vmatpush1.xpose.msra.mxu0 0.0
        %1124 = vmatprep.subr.mxu0 0.0
        %1125 = vmatpush1.xpose.msra.mxu0 0.0
        %1126 = vmatprep.subr.mxu0 0.0
        %1127 = vmatpush1.xpose.msra.mxu0 0.0
        %1128 = vmatprep.subr.mxu0 0.0
        %1129 = vmatpush1.xpose.msra.mxu0 0.0
        %1130 = vmatprep.subr.mxu0 0.0
        %1131 = vmatpush1.xpose.msra.mxu0 0.0
        %1132 = vmatprep.subr.mxu0 0.0
        %1133 = vmatpush1.xpose.msra.mxu0 0.0
        %1134 = vmatprep.subr.mxu0 0.0
        %1135 = vmatpush1.xpose.msra.mxu0 0.0
        %1136 = vmatprep.subr.mxu0 0.0
        %1137 = vmatpush1.xpose.msra.mxu0 0.0
        %1138 = vmatprep.subr.mxu0 0.0
        %1139 = vmatpush1.xpose.msra.mxu0 0.0
        %1140 = vmatprep.subr.mxu0 0.0
        %1141 = vmatpush1.xpose.msra.mxu0 0.0
        %1142 = vmatprep.subr.mxu0 0.0
        %1143 = vmatpush1.xpose.msra.mxu0 0.0
        %1144 = vmatprep.subr.mxu0 0.0
        %1145 = vmatpush1.xpose.msra.mxu0 0.0
        %1146 = vmatprep.subr.mxu0 0.0
        %1147 = vmatpush1.xpose.msra.mxu0 0.0
        %1148 = vmatprep.subr.mxu0 0.0
        %1149 = vmatpush1.xpose.msra.mxu0 0.0
        %1150 = vmatprep.mubr.f32.mxu0 0.0
        %1151 = vmatmul.mubr.f32.gmra.mrb[0].mxu0 %v1081
        %v1152 = vpop.f32.mrb[0].mxu0
        %v1153 = vadd.f32 0.0, %v1152
        %v1154 = vpop.f32.mrb[0].mxu0
        %1155 = vdwg.mxu0
        %v1156 = vmul.f32 %v1077, 0.25
        %v1157 = vmul.f32 %v1153, 0.25
        %vm1158 = vcmask 64512
        %v1159 = vsel %vm1158, %v1156, -inf
        %1160 = vmax.xlane.f32.xlu0 %v1159
        %v1161 = vpop.xlane.xlu0 %1160
        %v1162 = vsel %vm1158, %v1157, -inf
        %1163 = vmax.xlane.f32.xlu0 %v1162
        %v1164 = vpop.xlane.xlu0 %1163
        %v1165 = vsub.f32 %v1156, %v1161
        %v1166 = vsub.f32 %v1157, %v1164
        %v1167 = vmul.f32 %v1165, 1.442695
        %v1168 = vpow.pop %v1167
        %v1169 = vmul.f32 %v1166, 1.442695
        %v1170 = vpow.pop %v1169
        %v1171 = vsel %vm1158, %v1168, 0.0
        %1172 = vadd.xlane.f32.xlu0 %v1171
        %v1173 = vpop.xlane.xlu0 %1172
        %v1174 = vsel %vm1158, %v1170, 0.0
        %1175 = vadd.xlane.f32.xlu0 %v1174
        %v1176 = vpop.xlane.xlu0 %1175
        %v1178 = vsel %vm1158, %v1168, 0
        %1180 = vmatprep.subr.mxu0 0.0
        %1181 = vmatpush1.msra.mxu0 %v926
        %1182 = vmatprep.subr.mxu0 0.0
        %1183 = vmatpush1.msra.mxu0 0.0
        %1184 = vmatprep.subr.mxu0 0.0
        %1185 = vmatpush1.msra.mxu0 0.0
        %1186 = vmatprep.subr.mxu0 0.0
        %1187 = vmatpush1.msra.mxu0 0.0
        %1188 = vmatprep.subr.mxu0 0.0
        %1189 = vmatpush1.msra.mxu0 0.0
        %1190 = vmatprep.subr.mxu0 0.0
        %1191 = vmatpush1.msra.mxu0 0.0
        %1192 = vmatprep.subr.mxu0 0.0
        %1193 = vmatpush1.msra.mxu0 0.0
        %1194 = vmatprep.subr.mxu0 0.0
        %1195 = vmatpush1.msra.mxu0 0.0
        %1196 = vmatprep.subr.mxu0 0.0
        %1197 = vmatpush1.msra.mxu0 0.0
        %1198 = vmatprep.subr.mxu0 0.0
        %1199 = vmatpush1.msra.mxu0 0.0
        %1200 = vmatprep.subr.mxu0 0.0
        %1201 = vmatpush1.msra.mxu0 0.0
        %1202 = vmatprep.subr.mxu0 0.0
        %1203 = vmatpush1.msra.mxu0 0.0
        %1204 = vmatprep.subr.mxu0 0.0
        %1205 = vmatpush1.msra.mxu0 0.0
        %1206 = vmatprep.subr.mxu0 0.0
        %1207 = vmatpush1.msra.mxu0 0.0
        %1208 = vmatprep.subr.mxu0 0.0
        %1209 = vmatpush1.msra.mxu0 0.0
        %1210 = vmatprep.subr.mxu0 0.0
        %1211 = vmatpush1.msra.mxu0 0.0
        %1212 = vmatprep.subr.mxu0 0.0
        %1213 = vmatpush1.msra.mxu0 0.0
        %1214 = vmatprep.subr.mxu0 0.0
        %1215 = vmatpush1.msra.mxu0 0.0
        %1216 = vmatprep.subr.mxu0 0.0
        %1217 = vmatpush1.msra.mxu0 0.0
        %1218 = vmatprep.subr.mxu0 0.0
        %1219 = vmatpush1.msra.mxu0 0.0
        %1220 = vmatprep.subr.mxu0 0.0
        %1221 = vmatpush1.msra.mxu0 0.0
        %1222 = vmatprep.subr.mxu0 0.0
        %1223 = vmatpush1.msra.mxu0 0.0
        %1224 = vmatprep.subr.mxu0 0.0
        %1225 = vmatpush1.msra.mxu0 0.0
        %1226 = vmatprep.subr.mxu0 0.0
        %1227 = vmatpush1.msra.mxu0 0.0
        %1228 = vmatprep.subr.mxu0 0.0
        %1229 = vmatpush1.msra.mxu0 0.0
        %1230 = vmatprep.subr.mxu0 0.0
        %1231 = vmatpush1.msra.mxu0 0.0
        %1232 = vmatprep.subr.mxu0 0.0
        %1233 = vmatpush1.msra.mxu0 0.0
        %1234 = vmatprep.subr.mxu0 0.0
        %1235 = vmatpush1.msra.mxu0 0.0
        %1236 = vmatprep.subr.mxu0 0.0
        %1237 = vmatpush1.msra.mxu0 0.0
        %1238 = vmatprep.subr.mxu0 0.0
        %1239 = vmatpush1.msra.mxu0 0.0
        %1240 = vmatprep.subr.mxu0 0.0
        %1241 = vmatpush1.msra.mxu0 0.0
        %1242 = vmatprep.subr.mxu0 0.0
        %1243 = vmatpush1.msra.mxu0 0.0
        %1244 = vmatprep.mubr.f32.mxu0 0.0
        %1245 = vmatmul.mubr.f32.gmra.mrb[0].mxu0 %v1178
        %v1246 = vpop.f32.mrb[0].mxu0
        %v1247 = vadd.f32 0.0, %v1246
        %v1248 = vpop.f32.mrb[0].mxu0
        %1249 = vdwg.mxu0
        %v1251 = vsel %vm1158, %v1170, 0
        %1253 = vmatprep.subr.mxu0 0.0
        %1254 = vmatpush1.msra.mxu0 %v996
        %1255 = vmatprep.subr.mxu0 0.0
        %1256 = vmatpush1.msra.mxu0 0.0
        %1257 = vmatprep.subr.mxu0 0.0
        %1258 = vmatpush1.msra.mxu0 0.0
        %1259 = vmatprep.subr.mxu0 0.0
        %1260 = vmatpush1.msra.mxu0 0.0
        %1261 = vmatprep.subr.mxu0 0.0
        %1262 = vmatpush1.msra.mxu0 0.0
        %1263 = vmatprep.subr.mxu0 0.0
        %1264 = vmatpush1.msra.mxu0 0.0
        %1265 = vmatprep.subr.mxu0 0.0
        %1266 = vmatpush1.msra.mxu0 0.0
        %1267 = vmatprep.subr.mxu0 0.0
        %1268 = vmatpush1.msra.mxu0 0.0
        %1269 = vmatprep.subr.mxu0 0.0
        %1270 = vmatpush1.msra.mxu0 0.0
        %1271 = vmatprep.subr.mxu0 0.0
        %1272 = vmatpush1.msra.mxu0 0.0
        %1273 = vmatprep.subr.mxu0 0.0
        %1274 = vmatpush1.msra.mxu0 0.0
        %1275 = vmatprep.subr.mxu0 0.0
        %1276 = vmatpush1.msra.mxu0 0.0
        %1277 = vmatprep.subr.mxu0 0.0
        %1278 = vmatpush1.msra.mxu0 0.0
        %1279 = vmatprep.subr.mxu0 0.0
        %1280 = vmatpush1.msra.mxu0 0.0
        %1281 = vmatprep.subr.mxu0 0.0
        %1282 = vmatpush1.msra.mxu0 0.0
        %1283 = vmatprep.subr.mxu0 0.0
        %1284 = vmatpush1.msra.mxu0 0.0
        %1285 = vmatprep.subr.mxu0 0.0
        %1286 = vmatpush1.msra.mxu0 0.0
        %1287 = vmatprep.subr.mxu0 0.0
        %1288 = vmatpush1.msra.mxu0 0.0
        %1289 = vmatprep.subr.mxu0 0.0
        %1290 = vmatpush1.msra.mxu0 0.0
        %1291 = vmatprep.subr.mxu0 0.0
        %1292 = vmatpush1.msra.mxu0 0.0
        %1293 = vmatprep.subr.mxu0 0.0
        %1294 = vmatpush1.msra.mxu0 0.0
        %1295 = vmatprep.subr.mxu0 0.0
        %1296 = vmatpush1.msra.mxu0 0.0
        %1297 = vmatprep.subr.mxu0 0.0
        %1298 = vmatpush1.msra.mxu0 0.0
        %1299 = vmatprep.subr.mxu0 0.0
        %1300 = vmatpush1.msra.mxu0 0.0
        %1301 = vmatprep.subr.mxu0 0.0
        %1302 = vmatpush1.msra.mxu0 0.0
        %1303 = vmatprep.subr.mxu0 0.0
        %1304 = vmatpush1.msra.mxu0 0.0
        %1305 = vmatprep.subr.mxu0 0.0
        %1306 = vmatpush1.msra.mxu0 0.0
        %1307 = vmatprep.subr.mxu0 0.0
        %1308 = vmatpush1.msra.mxu0 0.0
        %1309 = vmatprep.subr.mxu0 0.0
        %1310 = vmatpush1.msra.mxu0 0.0
        %1311 = vmatprep.subr.mxu0 0.0
        %1312 = vmatpush1.msra.mxu0 0.0
        %1313 = vmatprep.subr.mxu0 0.0
        %1314 = vmatpush1.msra.mxu0 0.0
        %1315 = vmatprep.subr.mxu0 0.0
        %1316 = vmatpush1.msra.mxu0 0.0
        %1317 = vmatprep.mubr.f32.mxu0 0.0
        %1318 = vmatmul.mubr.f32.gmra.mrb[0].mxu0 %v1251
        %v1319 = vpop.f32.mrb[0].mxu0
        %v1320 = vadd.f32 0.0, %v1319
        %v1321 = vpop.f32.mrb[0].mxu0
        %1322 = vdwg.mxu0
        %v1323 = vrcp.pop %v1173
        %v1324 = vrcp.pop %v1176
        %v1325 = vmul.f32 %v1247, %v1323
        %v1326 = vmul.f32 %v1320, %v1324
        %v1327 = vld [vmem:[#allocation13] sm:$0x1]
        %v1328 = vld [vmem:[#allocation13 + $0x1] sm:$0x1]
        %v1331 = vlaneseq
        %v1332 = vshrl.u32 %v1331, 7
        %v1333 = vsub.s32 0, %v1332
        %v1334 = vrot.slane %v1327, %v1333
        %v1335 = vlaneseq
        %v1336 = vshrl.u32 %v1335, 7
        %v1337 = vsub.s32 0, %v1336
        %v1338 = vrot.slane %v1328, %v1337
        %v1342 = vsel %vm544, %v1325, 0
        %1344 = vmatprep.subr.mxu0 0.0
        %1345 = vmatpush1.msra.mxu0 %v526
        %1346 = vmatprep.subr.mxu0 0.0
        %1347 = vmatpush1.msra.mxu0 %v527
        %1348 = vmatprep.subr.mxu0 0.0
        %1349 = vmatpush1.msra.mxu0 0.0
        %1350 = vmatprep.subr.mxu0 0.0
        %1351 = vmatpush1.msra.mxu0 0.0
        %1352 = vmatprep.subr.mxu0 0.0
        %1353 = vmatpush1.msra.mxu0 0.0
        %1354 = vmatprep.subr.mxu0 0.0
        %1355 = vmatpush1.msra.mxu0 0.0
        %1356 = vmatprep.subr.mxu0 0.0
        %1357 = vmatpush1.msra.mxu0 0.0
        %1358 = vmatprep.subr.mxu0 0.0
        %1359 = vmatpush1.msra.mxu0 0.0
        %1360 = vmatprep.subr.mxu0 0.0
        %1361 = vmatpush1.msra.mxu0 0.0
        %1362 = vmatprep.subr.mxu0 0.0
        %1363 = vmatpush1.msra.mxu0 0.0
        %1364 = vmatprep.subr.mxu0 0.0
        %1365 = vmatpush1.msra.mxu0 0.0
        %1366 = vmatprep.subr.mxu0 0.0
        %1367 = vmatpush1.msra.mxu0 0.0
        %1368 = vmatprep.subr.mxu0 0.0
        %1369 = vmatpush1.msra.mxu0 0.0
        %1370 = vmatprep.subr.mxu0 0.0
        %1371 = vmatpush1.msra.mxu0 0.0
        %1372 = vmatprep.subr.mxu0 0.0
        %1373 = vmatpush1.msra.mxu0 0.0
        %1374 = vmatprep.subr.mxu0 0.0
        %1375 = vmatpush1.msra.mxu0 0.0
        %1376 = vmatprep.subr.mxu0 0.0
        %1377 = vmatpush1.msra.mxu0 0.0
        %1378 = vmatprep.subr.mxu0 0.0
        %1379 = vmatpush1.msra.mxu0 0.0
        %1380 = vmatprep.subr.mxu0 0.0
        %1381 = vmatpush1.msra.mxu0 0.0
        %1382 = vmatprep.subr.mxu0 0.0
        %1383 = vmatpush1.msra.mxu0 0.0
        %1384 = vmatprep.subr.mxu0 0.0
        %1385 = vmatpush1.msra.mxu0 0.0
        %1386 = vmatprep.subr.mxu0 0.0
        %1387 = vmatpush1.msra.mxu0 0.0
        %1388 = vmatprep.subr.mxu0 0.0
        %1389 = vmatpush1.msra.mxu0 0.0
        %1390 = vmatprep.subr.mxu0 0.0
        %1391 = vmatpush1.msra.mxu0 0.0
        %1392 = vmatprep.subr.mxu0 0.0
        %1393 = vmatpush1.msra.mxu0 0.0
        %1394 = vmatprep.subr.mxu0 0.0
        %1395 = vmatpush1.msra.mxu0 0.0
        %1396 = vmatprep.subr.mxu0 0.0
        %1397 = vmatpush1.msra.mxu0 0.0
        %1398 = vmatprep.subr.mxu0 0.0
        %1399 = vmatpush1.msra.mxu0 0.0
        %1400 = vmatprep.subr.mxu0 0.0
        %1401 = vmatpush1.msra.mxu0 0.0
        %1402 = vmatprep.subr.mxu0 0.0
        %1403 = vmatpush1.msra.mxu0 0.0
        %1404 = vmatprep.subr.mxu0 0.0
        %1405 = vmatpush1.msra.mxu0 0.0
        %1406 = vmatprep.subr.mxu0 0.0
        %1407 = vmatpush1.msra.mxu0 0.0
        %1408 = vmatprep.mubr.f32.mxu0 0.0
        %1409 = vmatmul.mubr.f32.gmra.mrb[0].mxu0 %v1342
        %v1410 = vpop.f32.mrb[0].mxu0
        %v1411 = vadd.f32 %v1334, %v1410
        %v1412 = vpop.f32.mrb[0].mxu0
        %1413 = vdwg.mxu0
        %v1415 = vsel %vm544, %v1326, 0
        %1417 = vmatprep.subr.mxu0 0.0
        %1418 = vmatpush1.msra.mxu0 %v528
        %1419 = vmatprep.subr.mxu0 0.0
        %1420 = vmatpush1.msra.mxu0 %v529
        %1421 = vmatprep.subr.mxu0 0.0
        %1422 = vmatpush1.msra.mxu0 0.0
        %1423 = vmatprep.subr.mxu0 0.0
        %1424 = vmatpush1.msra.mxu0 0.0
        %1425 = vmatprep.subr.mxu0 0.0
        %1426 = vmatpush1.msra.mxu0 0.0
        %1427 = vmatprep.subr.mxu0 0.0
        %1428 = vmatpush1.msra.mxu0 0.0
        %1429 = vmatprep.subr.mxu0 0.0
        %1430 = vmatpush1.msra.mxu0 0.0
        %1431 = vmatprep.subr.mxu0 0.0
        %1432 = vmatpush1.msra.mxu0 0.0
        %1433 = vmatprep.subr.mxu0 0.0
        %1434 = vmatpush1.msra.mxu0 0.0
        %1435 = vmatprep.subr.mxu0 0.0
        %1436 = vmatpush1.msra.mxu0 0.0
        %1437 = vmatprep.subr.mxu0 0.0
        %1438 = vmatpush1.msra.mxu0 0.0
        %1439 = vmatprep.subr.mxu0 0.0
        %1440 = vmatpush1.msra.mxu0 0.0
        %1441 = vmatprep.subr.mxu0 0.0
        %1442 = vmatpush1.msra.mxu0 0.0
        %1443 = vmatprep.subr.mxu0 0.0
        %1444 = vmatpush1.msra.mxu0 0.0
        %1445 = vmatprep.subr.mxu0 0.0
        %1446 = vmatpush1.msra.mxu0 0.0
        %1447 = vmatprep.subr.mxu0 0.0
        %1448 = vmatpush1.msra.mxu0 0.0
        %1449 = vmatprep.subr.mxu0 0.0
        %1450 = vmatpush1.msra.mxu0 0.0
        %1451 = vmatprep.subr.mxu0 0.0
        %1452 = vmatpush1.msra.mxu0 0.0
        %1453 = vmatprep.subr.mxu0 0.0
        %1454 = vmatpush1.msra.mxu0 0.0
        %1455 = vmatprep.subr.mxu0 0.0
        %1456 = vmatpush1.msra.mxu0 0.0
        %1457 = vmatprep.subr.mxu0 0.0
        %1458 = vmatpush1.msra.mxu0 0.0
        %1459 = vmatprep.subr.mxu0 0.0
        %1460 = vmatpush1.msra.mxu0 0.0
        %1461 = vmatprep.subr.mxu0 0.0
        %1462 = vmatpush1.msra.mxu0 0.0
        %1463 = vmatprep.subr.mxu0 0.0
        %1464 = vmatpush1.msra.mxu0 0.0
        %1465 = vmatprep.subr.mxu0 0.0
        %1466 = vmatpush1.msra.mxu0 0.0
        %1467 = vmatprep.subr.mxu0 0.0
        %1468 = vmatpush1.msra.mxu0 0.0
        %1469 = vmatprep.subr.mxu0 0.0
        %1470 = vmatpush1.msra.mxu0 0.0
        %1471 = vmatprep.subr.mxu0 0.0
        %1472 = vmatpush1.msra.mxu0 0.0
        %1473 = vmatprep.subr.mxu0 0.0
        %1474 = vmatpush1.msra.mxu0 0.0
        %1475 = vmatprep.subr.mxu0 0.0
        %1476 = vmatpush1.msra.mxu0 0.0
        %1477 = vmatprep.subr.mxu0 0.0
        %1478 = vmatpush1.msra.mxu0 0.0
        %1479 = vmatprep.subr.mxu0 0.0
        %1480 = vmatpush1.msra.mxu0 0.0
        %1481 = vmatprep.mubr.f32.mxu0 0.0
        %1482 = vmatmul.mubr.f32.gmra.mrb[0].mxu0 %v1415
        %v1483 = vpop.f32.mrb[0].mxu0
        %v1484 = vadd.f32 %v1338, %v1483
        %v1485 = vpop.f32.mrb[0].mxu0
        %1486 = vdwg.mxu0
        %v1487 = vadd.f32 %v1411, %v512
        %v1488 = vadd.f32 %v1484, %v513
        %1489 = vst.msk [vmem:[%s496] sm:$0xff] %vm544, %v1487
        %1490 = vst.msk [vmem:[%s503] sm:$0xff] %vm544, %v1488
        %s1491 = sand.u32 %s261, 1
        %s1492 = scalar_lea.sflag [#allocation4], %s1491
        %s1493 = sand.u32 %s261, 1
        %s1494 = smul.addr %s1493, 8
        %s1495 = scalar_lea.vmem [#allocation14], %s1494
        %s1496 = sand.u32 %s287, 1
        %s1497 = scalar_lea.sflag [#allocation16], %s1496
        %s1498 = sand.u32 %s287, 1
        %s1499 = smul.addr %s1498, 8
        %s1500 = scalar_lea.vmem [#allocation15], %s1499
        // Predicated region
        $region89: #{tpu_custom_call.1} parent=59 // pred_check
          %p1501 = pneg %p271
        $region90: #{tpu_custom_call.1} parent=59 // pred_check_branch
          %1503 = sbr.rel (%p1501) target = $region92
        $region91: #{tpu_custom_call.1} parent=59 // pred_region
          %s1505 = ssub.s32 128, 128
          %1506 = vsyncadd %s1492, %s1505
          %s1507 = smul.addr %s33, 128
          %s1508 = scalar_lea.hbm %s10, %s1507
          %s1510 = sshll.u32 %s1495, 4
          %s1511 = int_to_ptr.vmem [resolvable:$true] %s1510
          %1513 = dma.vmem_to_hbm [thread:$0]  %s1511, 128, %s1508, %s1492
        $region92: #{tpu_custom_call.1} parent=59 // pred_fallthru
          _
        // Predicated region
        $region93: #{tpu_custom_call.1} parent=59 // pred_check
          %p1514 = pneg %p297
        $region94: #{tpu_custom_call.1} parent=59 // pred_check_branch
          %1516 = sbr.rel (%p1514) target = $region96
        $region95: #{tpu_custom_call.1} parent=59 // pred_region
          %s1518 = ssub.s32 128, 128
          %1519 = vsyncadd %s1497, %s1518
          %s1520 = smul.addr %s33, 128
          %s1521 = scalar_lea.hbm %s11, %s1520
          %s1523 = sshll.u32 %s1500, 4
          %s1524 = int_to_ptr.vmem [resolvable:$true] %s1523
          %1526 = dma.vmem_to_hbm [thread:$0]  %s1524, 128, %s1521, %s1497
        $region96: #{tpu_custom_call.1} parent=59 // pred_fallthru
          _
      $region60: #{tpu_custom_call.1} parent=5 // pred_fallthru
        _
      %p1527 = scmp.le.s32.totalorder 2, %s28
      // Predicated region
      $region97: #{tpu_custom_call.1} parent=5 // pred_check
        %p1528 = pneg %p1527
      $region98: #{tpu_custom_call.1} parent=5 // pred_check_branch
        %1530 = sbr.rel (%p1528) target = $region100
      $region99: #{tpu_custom_call.1} parent=5 // pred_region
        %s1531 = ssub.s32 %s28, 2
        // Predicated region
        $region101: #{tpu_custom_call.1} parent=99 // pred_check
          %p1532 = pneg %p277
        $region102: #{tpu_custom_call.1} parent=99 // pred_check_branch
          %1534 = sbr.rel (%p1532) target = $region104
        $region103: #{tpu_custom_call.1} parent=99 // pred_region
          %s1535 = sand.u32 %s262, 1
          %s1536 = scalar_lea.sflag [#allocation4], %s1535
          %s1537 = sand.u32 %s262, 1
          %s1538 = smul.addr %s1537, 8
          %s1539 = scalar_lea.vmem [#allocation14], %s1538
          %1540 = dma.done %s1536, 128
        $region104: #{tpu_custom_call.1} parent=99 // pred_fallthru
          _
        // Predicated region
        $region105: #{tpu_custom_call.1} parent=99 // pred_check
          %p1541 = pneg %p303
        $region106: #{tpu_custom_call.1} parent=99 // pred_check_branch
          %1543 = sbr.rel (%p1541) target = $region108
        $region107: #{tpu_custom_call.1} parent=99 // pred_region
          %s1544 = sand.u32 %s288, 1
          %s1545 = scalar_lea.sflag [#allocation16], %s1544
          %s1546 = sand.u32 %s288, 1
          %s1547 = smul.addr %s1546, 8
          %s1548 = scalar_lea.vmem [#allocation15], %s1547
          %1549 = dma.done %s1545, 128
        $region108: #{tpu_custom_call.1} parent=99 // pred_fallthru
          _
      $region100: #{tpu_custom_call.1} parent=5 // pred_fallthru
        _
    $region6: #{tpu_custom_call.1} parent=1 // loop_footer
      %s32 = sadd.s32 1, %s28
    $region7: #{tpu_custom_call.1} parent=1 // loop_footer_branch
      %27 = sbr.rel target = $region3
    $region8: #{tpu_custom_call.1} parent=1 // loop_exit
      _
    %1550 = vsyncpa [#allocation3], 1
    %s1551 = scalar_lea.sflag [#allocation3], 1
    %1552 = vsyncpa %s1551, 1
    %1553 = vsyncpa [#allocation6], 1
    %1554 = vsyncpa [#allocation9], 1
    %1555 = vsyncpa [#allocation12], 1
    %1556 = vsyncpa [#allocation4], 1
    %s1557 = scalar_lea.sflag [#allocation4], 1
    %1558 = vsyncpa %s1557, 1
    %1559 = vsyncpa [#allocation16], 1
    %s1560 = scalar_lea.sflag [#allocation16], 1
    %1561 = vsyncpa %s1560, 1

</llo_original>
